<compile_context>
chip_gen: v7x
topology: tpu7x:2x2x1
jax: 0.10.0
libtpu: 0.0.40
codegen_flags: <defaults>
</compile_context>

<pallas_src>
import functools

import jax
import jax.numpy as jnp
from jax import lax
from jax.experimental import pallas as pl
from jax.experimental.pallas import tpu as pltpu

LANE = 128
BATCH_ALIGN = 16        # bf16 packs 16 rows per vreg sublane group
MAX_BATCH_TILE = 256    # M=256 fills the 256-wide MXU; >=2 grid steps when B>256


def _round_up(x, m):
    return ((x + m - 1) // m) * m


def _pad_dim(d):
    # v6e/v7x MXUs are 2x256x256: pad feature dims > 128 to multiples of 256
    # (avoids half-filled MXU passes); smaller dims only need lane padding.
    grain = 256 if d > 128 else LANE
    return _round_up(d, grain)


def _vmem_capacity_bytes():
    """Physical VMEM per TensorCore (generation-aware), with a safe fallback."""
    try:
        cap = getattr(pltpu.get_tpu_info(), "vmem_capacity_bytes", None)
        if cap:
            return int(cap)
    except Exception:
        pass
    return 64 << 20  # conservative fallback: v7x has 64 MiB per TensorCore


def _resident_spec(block_shape, index_map, single_buffer):
    """Constant-index weight/bias spec, single-buffered (DMA'd exactly once)."""
    if single_buffer:
        return pl.BlockSpec(block_shape, index_map, pipeline_mode=pl.Buffered(1))
    return pl.BlockSpec(block_shape, index_map)


# --------------------------------------------------------------------------
# Kernels
# --------------------------------------------------------------------------
def resfc_resident_kernel(x_ref, wi_ref, bi_ref, w0_ref, b0_ref, w1_ref,
                          b1_ref, wf_ref, bf_ref, out_ref):
    """One batch tile; all weights VMEM-resident.

    x_ref : [TB, Din_p]   bf16
    wi_ref: [Din_p, H_p]  bf16,  bi_ref: [1, H_p]     f32
    w0_ref: [L, H_p, H_p] bf16,  b0_ref: [L, 1, H_p]  f32  (1st linear of block)
    w1_ref: [L, H_p, H_p] bf16,  b1_ref: [L, 1, H_p]  f32  (2nd linear of block)
    wf_ref: [H_p, Dout_p] bf16,  bf_ref: [1, Dout_p]  f32
    out_ref: [TB, Dout_p]
    """
    # initial_layer + activation (bf16 MXU matmul, f32 accumulate/elementwise)
    h = jnp.dot(x_ref[...], wi_ref[...],
                preferred_element_type=jnp.float32) + bi_ref[...]
    h = jnp.maximum(h, 0.0)

    def block_body(l, h):
        t = jnp.dot(h.astype(jnp.bfloat16), w0_ref[l],
                    preferred_element_type=jnp.float32) + b0_ref[l]
        t = jnp.maximum(t, 0.0)              # activation inside block
        # dropout(p=0.0) is identity
        t = jnp.dot(t.astype(jnp.bfloat16), w1_ref[l],
                    preferred_element_type=jnp.float32) + b1_ref[l]
        return jnp.maximum(h + t, 0.0)       # residual add + network-level relu

    num_blocks = w0_ref.shape[0]
    if num_blocks <= 4:
        # Small L: static unroll keeps full LLO scheduling visibility.
        for l in range(num_blocks):
            h = block_body(l, h)
    else:
        # Larger L: fori_loop bounds live ranges to one block's working set.
        h = lax.fori_loop(0, num_blocks, block_body, h)

    # final_layer (no activation)
    out = jnp.dot(h.astype(jnp.bfloat16), wf_ref[...],
                  preferred_element_type=jnp.float32) + bf_ref[...]
    out_ref[...] = out.astype(out_ref.dtype)


def resfc_streaming_kernel(x_ref, wi_ref, bi_ref, w0_ref, b0_ref, w1_ref,
                           b1_ref, wf_ref, bf_ref, out_ref, h_ref):
    """Weight-streaming variant: grid=(batch_tiles, num_blocks).

    w0/b0/w1/b1 are one residual block's weights (streamed per 'arbitrary'
    grid step, double-buffered by the pipeline); wi/bi/wf/bf stay resident.
    The hidden activation is carried across block steps in h_ref (VMEM).
    """
    l = pl.program_id(1)

    @pl.when(l == 0)
    def _():
        h0 = jnp.dot(x_ref[...], wi_ref[...],
                     preferred_element_type=jnp.float32) + bi_ref[...]
        h_ref[...] = jnp.maximum(h0, 0.0)

    h = h_ref[...]
    t = jnp.dot(h.astype(jnp.bfloat16), w0_ref[0],
                preferred_element_type=jnp.float32) + b0_ref[0]
    t = jnp.maximum(t, 0.0)                  # activation inside block
    # dropout(p=0.0) is identity
    t = jnp.dot(t.astype(jnp.bfloat16), w1_ref[0],
                preferred_element_type=jnp.float32) + b1_ref[0]
    h = jnp.maximum(h + t, 0.0)              # residual add + network-level relu
    h_ref[...] = h

    @pl.when(l == pl.num_programs(1) - 1)
    def _():
        out = jnp.dot(h.astype(jnp.bfloat16), wf_ref[...],
                      preferred_element_type=jnp.float32) + bf_ref[...]
        out_ref[...] = out.astype(out_ref.dtype)


# --------------------------------------------------------------------------
# Host-side wrappers
# --------------------------------------------------------------------------
def prepare_params(params):
    """Zero-pad feature dims (lane/MXU aligned) and cast weights to bf16.

    Zero padding is semantics-preserving: padded lanes of h stay exactly 0
    through relu / residual adds, and padded output lanes are sliced away.
    """
    wi, bi, w0s, b0s, w1s, b1s, wf, bf = params
    din, h = wi.shape
    dout = wf.shape[1]
    din_p, h_p, dout_p = _pad_dim(din), _pad_dim(h), _pad_dim(dout)

    def pad2(a, r, c):
        return jnp.pad(a, ((0, r - a.shape[0]), (0, c - a.shape[1])))

    wi_p = pad2(wi, din_p, h_p).astype(jnp.bfloat16)
    bi_p = pad2(bi, 1, h_p).astype(jnp.float32)
    w0_p = jnp.pad(w0s, ((0, 0), (0, h_p - h), (0, h_p - h))).astype(jnp.bfloat16)
    b0_p = jnp.pad(b0s, ((0, 0), (0, 0), (0, h_p - h))).astype(jnp.float32)
    w1_p = jnp.pad(w1s, ((0, 0), (0, h_p - h), (0, h_p - h))).astype(jnp.bfloat16)
    b1_p = jnp.pad(b1s, ((0, 0), (0, 0), (0, h_p - h))).astype(jnp.float32)
    wf_p = pad2(wf, h_p, dout_p).astype(jnp.bfloat16)
    bf_p = pad2(bf, 1, dout_p).astype(jnp.float32)
    return (wi_p, bi_p, w0_p, b0_p, w1_p, b1_p, wf_p, bf_p)


@functools.partial(
    jax.jit,
    static_argnames=("d_out", "out_dtype", "force_streaming",
                     "single_buffer_weights"))
def residual_fc_forward(x, padded_params, d_out, out_dtype=jnp.float32,
                        force_streaming=None, single_buffer_weights=True):
    wi, bi, w0s, b0s, w1s, b1s, wf, bf = padded_params
    B, d_in = x.shape
    din_p, h_p = wi.shape
    dout_p = wf.shape[1]
    L = w0s.shape[0]
    out_bytes = jnp.dtype(out_dtype).itemsize

    # Batch tile: 16-row aligned (bf16 sublane packing), capped at 256 so
    # batches > 256 produce >= 2 grid steps (megacore sharding on v7x) and
    # f32 intermediates stay small.
    B_al = _round_up(B, BATCH_ALIGN)
    TB = B_al if B_al <= MAX_BATCH_TILE else MAX_BATCH_TILE
    B_pad = _round_up(B_al, TB)
    x_p = jnp.pad(x, ((0, B_pad - B), (0, din_p - d_in))).astype(jnp.bfloat16)

    cap = _vmem_capacity_bytes()
    headroom = 8 << 20

    # Resident-path VMEM footprint (weights single-buffered via Buffered(1)).
    weight_bytes = 2 * (wi.size + w0s.size + w1s.size + wf.size)   # bf16
    bias_bytes = 4 * (bi.size + b0s.size + b1s.size + bf.size)     # f32
    io_bytes = 2 * (TB * din_p * 2 + TB * dout_p * out_bytes)      # 2x-buffered io
    act_bytes = 4 * TB * h_p * 4                                   # f32 h/t temps
    resident_vmem = weight_bytes + bias_bytes + io_bytes + act_bytes

    if force_streaming is None:
        use_streaming = resident_vmem > int(0.7 * (cap - headroom))
    else:
        use_streaming = bool(force_streaming)

    if not use_streaming:
        vmem_limit = int(min(cap - headroom,
                             max(32 << 20, 1.5 * resident_vmem)))
        const2 = lambda i: (0, 0)
        const3 = lambda i: (0, 0, 0)
        sb = single_buffer_weights
        out_p = pl.pallas_call(
            resfc_resident_kernel,
            out_shape=jax.ShapeDtypeStruct((B_pad, dout_p), out_dtype),
            grid_spec=pltpu.PrefetchScalarGridSpec(
                num_scalar_prefetch=0,
                grid=(B_pad // TB,),
                in_specs=[
                    pl.BlockSpec((TB, din_p), lambda i: (i, 0)),        # x tile
                    _resident_spec((din_p, h_p), const2, sb),           # wi
                    _resident_spec((1, h_p), const2, sb),               # bi
                    _resident_spec((L, h_p, h_p), const3, sb),          # w0s
                    _resident_spec((L, 1, h_p), const3, sb),            # b0s
                    _resident_spec((L, h_p, h_p), const3, sb),          # w1s
                    _resident_spec((L, 1, h_p), const3, sb),            # b1s
                    _resident_spec((h_p, dout_p), const2, sb),          # wf
                    _resident_spec((1, dout_p), const2, sb),            # bf
                ],
                out_specs=pl.BlockSpec((TB, dout_p), lambda i: (i, 0)),
            ),
            compiler_params=pltpu.CompilerParams(
                dimension_semantics=("parallel",),
                vmem_limit_bytes=vmem_limit,
            ),
        )(x_p, wi, bi, w0s, b0s, w1s, b1s, wf, bf)
    else:
        # Streaming path: footprint ~2 blocks' weights regardless of L.
        stream_vmem = (
            2 * (wi.size + wf.size) + 4 * (bi.size + bf.size)      # resident io layers
            + 2 * 2 * (h_p * h_p * 2 + h_p * 4)                    # 2x-buffered block w/b
            + io_bytes
            + TB * h_p * 4                                         # h carry scratch
            + 3 * TB * h_p * 4)                                    # f32 temporaries
        vmem_limit = int(min(cap - headroom,
                             max(32 << 20, 1.5 * stream_vmem)))
        const2s = lambda i, l: (0, 0)
        blk3 = lambda i, l: (l, 0, 0)
        sb = single_buffer_weights
        out_p = pl.pallas_call(
            resfc_streaming_kernel,
            out_shape=jax.ShapeDtypeStruct((B_pad, dout_p), out_dtype),
            grid_spec=pltpu.PrefetchScalarGridSpec(
                num_scalar_prefetch=0,
                grid=(B_pad // TB, L),
                in_specs=[
                    pl.BlockSpec((TB, din_p), lambda i, l: (i, 0)),     # x tile
                    _resident_spec((din_p, h_p), const2s, sb),          # wi
                    _resident_spec((1, h_p), const2s, sb),              # bi
                    pl.BlockSpec((1, h_p, h_p), blk3),                  # w0[l] streamed
                    pl.BlockSpec((1, 1, h_p), blk3),                    # b0[l]
                    pl.BlockSpec((1, h_p, h_p), blk3),                  # w1[l] streamed
                    pl.BlockSpec((1, 1, h_p), blk3),                    # b1[l]
                    _resident_spec((h_p, dout_p), const2s, sb),         # wf
                    _resident_spec((1, dout_p), const2s, sb),           # bf
                ],
                out_specs=pl.BlockSpec((TB, dout_p), lambda i, l: (i, 0)),
                scratch_shapes=[pltpu.VMEM((TB, h_p), jnp.float32)],
            ),
            compiler_params=pltpu.CompilerParams(
                dimension_semantics=("parallel", "arbitrary"),
                vmem_limit_bytes=vmem_limit,
            ),
        )(x_p, wi, bi, w0s, b0s, w1s, b1s, wf, bf)

    # Slice away batch and lane padding (lane-dense inside the kernel).
    return out_p[:B, :d_out]


def _forward_with_fallback(x, padded_params, **static_kwargs):
    """Call the jitted forward; if pipeline_mode=pl.Buffered(1) is not
    supported by this jax/libtpu, retry with default double-buffering."""
    try:
        return residual_fc_forward(x, padded_params, **static_kwargs)
    except Exception:
        return residual_fc_forward(x, padded_params,
                                   single_buffer_weights=False, **static_kwargs)


# --------------------------------------------------------------------------
# Parameter init + pure-JAX reference
# --------------------------------------------------------------------------
def init_params(key, input_dim, output_dim, num_blocks, hidden):
    ks = jax.random.split(key, 8)
    scale = 0.1
    wi = scale * jax.random.normal(ks[0], (input_dim, hidden), jnp.float32)
    bi = scale * jax.random.normal(ks[1], (1, hidden), jnp.float32)
    w0s = scale * jax.random.normal(ks[2], (num_blocks, hidden, hidden), jnp.float32)
    b0s = scale * jax.random.normal(ks[3], (num_blocks, 1, hidden), jnp.float32)
    w1s = scale * jax.random.normal(ks[4], (num_blocks, hidden, hidden), jnp.float32)
    b1s = scale * jax.random.normal(ks[5], (num_blocks, 1, hidden), jnp.float32)
    wf = scale * jax.random.normal(ks[6], (hidden, output_dim), jnp.float32)
    bf = scale * jax.random.normal(ks[7], (1, output_dim), jnp.float32)
    return (wi, bi, w0s, b0s, w1s, b1s, wf, bf)


def reference_forward(x, params):
    """Pure-JAX f32 reference (mirrors the PyTorch forward)."""
    wi, bi, w0s, b0s, w1s, b1s, wf, bf = params
    h = jnp.maximum(x @ wi + bi, 0.0)
    for l in range(w0s.shape[0]):
        t = jnp.maximum(h @ w0s[l] + b0s[l], 0.0)
        t = t @ w1s[l] + b1s[l]
        h = jnp.maximum(h + t, 0.0)
    return h @ wf + bf


if __name__ == "__main__":
    key = jax.random.PRNGKey(0)
    k_x, k_p = jax.random.split(key)

    batch = 8
    input_dim = 16
    output_dim = 8
    num_residual_blocks = 2
    residual_block_dim = 32

    x = jax.random.normal(k_x, (batch, input_dim), jnp.float32)
    params = init_params(k_p, input_dim, output_dim, num_residual_blocks,
                         residual_block_dim)
    padded_params = prepare_params(params)
    ref = reference_forward(x, params)

    # Resident-weight path (auto-selected for configs that fit VMEM).
    out = _forward_with_fallback(x, padded_params, d_out=output_dim)
    out = jax.block_until_ready(out)
    assert out.shape == (batch, output_dim)
    # bf16 matmul inputs with f32 accumulation -> relaxed tolerance vs f32 ref.
    assert jnp.allclose(out, ref, atol=3e-2, rtol=3e-2), float(
        jnp.max(jnp.abs(out - ref)))

    # Weight-streaming path (auto-selected when L*H^2 would not fit VMEM,
    # e.g. v7x's 64 MiB/TC); force it here to validate correctness too.
    out_s = _forward_with_fallback(x, padded_params, d_out=output_dim,
                                   force_streaming=True)
    out_s = jax.block_until_ready(out_s)
    assert out_s.shape == (batch, output_dim)
    assert jnp.allclose(out_s, ref, atol=3e-2, rtol=3e-2), float(
        jnp.max(jnp.abs(out_s - ref)))

    print("KERNEL_OK")
</pallas_src>

<mosaic_0001>
module attributes {stable_mosaic.version = 11 : i64} {
  func.func @resfc_resident_kernel(%arg0: i32, %arg1: memref<16x128xbf16, #tpu.memory_space<vmem>>, %arg2: memref<128x128xbf16, #tpu.memory_space<vmem>>, %arg3: memref<1x128xf32, #tpu.memory_space<vmem>>, %arg4: memref<2x128x128xbf16, #tpu.memory_space<vmem>>, %arg5: memref<2x1x128xf32, #tpu.memory_space<vmem>>, %arg6: memref<2x128x128xbf16, #tpu.memory_space<vmem>>, %arg7: memref<2x1x128xf32, #tpu.memory_space<vmem>>, %arg8: memref<128x128xbf16, #tpu.memory_space<vmem>>, %arg9: memref<1x128xf32, #tpu.memory_space<vmem>>, %arg10: memref<16x128xf32, #tpu.memory_space<vmem>>) attributes {dimension_semantics = [#tpu.dimension_semantics<parallel>], iteration_bounds = array<i64: 1>, scalar_prefetch = 0 : i64, scratch_operands = 0 : i64, tpu.core_type = #tpu.core_type<tc>, window_params = [{transform_indices = @transform_0, window_bounds = array<i64: 16, 128>}, {pipeline_mode = #tpu.pipeline_mode<synchronous>, transform_indices = @transform_1, window_bounds = array<i64: 128, 128>}, {pipeline_mode = #tpu.pipeline_mode<synchronous>, transform_indices = @transform_2, window_bounds = array<i64: 1, 128>}, {pipeline_mode = #tpu.pipeline_mode<synchronous>, transform_indices = @transform_3, window_bounds = array<i64: 2, 128, 128>}, {pipeline_mode = #tpu.pipeline_mode<synchronous>, transform_indices = @transform_4, window_bounds = array<i64: 2, 1, 128>}, {pipeline_mode = #tpu.pipeline_mode<synchronous>, transform_indices = @transform_5, window_bounds = array<i64: 2, 128, 128>}, {pipeline_mode = #tpu.pipeline_mode<synchronous>, transform_indices = @transform_6, window_bounds = array<i64: 2, 1, 128>}, {pipeline_mode = #tpu.pipeline_mode<synchronous>, transform_indices = @transform_7, window_bounds = array<i64: 128, 128>}, {pipeline_mode = #tpu.pipeline_mode<synchronous>, transform_indices = @transform_8, window_bounds = array<i64: 1, 128>}, {transform_indices = @transform_9, window_bounds = array<i64: 16, 128>}]} {
    %c0 = arith.constant 0 : index
    %c0_0 = arith.constant 0 : index
    %0 = vector.load %arg1[%c0, %c0_0] : memref<16x128xbf16, #tpu.memory_space<vmem>>, vector<16x128xbf16>
    %c0_1 = arith.constant 0 : index
    %c0_2 = arith.constant 0 : index
    %1 = vector.load %arg2[%c0_1, %c0_2] : memref<128x128xbf16, #tpu.memory_space<vmem>>, vector<128x128xbf16>
    %cst = arith.constant dense<0.000000e+00> : vector<16x128xf32>
    %2 = tpu.matmul %0, %1, %cst {dimension_numbers = #tpu.dot_dimension_numbers<[1], [0], [0], [1], [0, 0, 1, 1], [], []>} : vector<16x128xbf16>, vector<128x128xbf16>, vector<16x128xf32> -> vector<16x128xf32>
    %c0_3 = arith.constant 0 : index
    %c0_4 = arith.constant 0 : index
    %3 = vector.load %arg3[%c0_3, %c0_4] : memref<1x128xf32, #tpu.memory_space<vmem>>, vector<1x128xf32>
    %4 = vector.broadcast %3 : vector<1x128xf32> to vector<16x128xf32>
    %5 = arith.addf %2, %4 : vector<16x128xf32>
    %cst_5 = arith.constant 0.000000e+00 : f32
    %6 = vector.broadcast %cst_5 : f32 to vector<16x128xf32>
    %7 = arith.maximumf %5, %6 : vector<16x128xf32>
    %8 = arith.truncf %7 : vector<16x128xf32> to vector<16x128xbf16>
    %c0_6 = arith.constant 0 : index
    %c0_7 = arith.constant 0 : index
    %c0_8 = arith.constant 0 : index
    %9 = vector.load %arg4[%c0_6, %c0_7, %c0_8] : memref<2x128x128xbf16, #tpu.memory_space<vmem>>, vector<1x128x128xbf16>
    %10 = vector.shape_cast %9 : vector<1x128x128xbf16> to vector<128x128xbf16>
    %cst_9 = arith.constant dense<0.000000e+00> : vector<16x128xf32>
    %11 = tpu.matmul %8, %10, %cst_9 {dimension_numbers = #tpu.dot_dimension_numbers<[1], [0], [0], [1], [0, 0, 1, 1], [], []>} : vector<16x128xbf16>, vector<128x128xbf16>, vector<16x128xf32> -> vector<16x128xf32>
    %c0_10 = arith.constant 0 : index
    %c0_11 = arith.constant 0 : index
    %c0_12 = arith.constant 0 : index
    %12 = vector.load %arg5[%c0_10, %c0_11, %c0_12] : memref<2x1x128xf32, #tpu.memory_space<vmem>>, vector<1x1x128xf32>
    %13 = vector.shape_cast %12 : vector<1x1x128xf32> to vector<1x128xf32>
    %14 = vector.broadcast %13 : vector<1x128xf32> to vector<16x128xf32>
    %15 = arith.addf %11, %14 : vector<16x128xf32>
    %cst_13 = arith.constant 0.000000e+00 : f32
    %16 = vector.broadcast %cst_13 : f32 to vector<16x128xf32>
    %17 = arith.maximumf %15, %16 : vector<16x128xf32>
    %18 = arith.truncf %17 : vector<16x128xf32> to vector<16x128xbf16>
    %c0_14 = arith.constant 0 : index
    %c0_15 = arith.constant 0 : index
    %c0_16 = arith.constant 0 : index
    %19 = vector.load %arg6[%c0_14, %c0_15, %c0_16] : memref<2x128x128xbf16, #tpu.memory_space<vmem>>, vector<1x128x128xbf16>
    %20 = vector.shape_cast %19 : vector<1x128x128xbf16> to vector<128x128xbf16>
    %cst_17 = arith.constant dense<0.000000e+00> : vector<16x128xf32>
    %21 = tpu.matmul %18, %20, %cst_17 {dimension_numbers = #tpu.dot_dimension_numbers<[1], [0], [0], [1], [0, 0, 1, 1], [], []>} : vector<16x128xbf16>, vector<128x128xbf16>, vector<16x128xf32> -> vector<16x128xf32>
    %c0_18 = arith.constant 0 : index
    %c0_19 = arith.constant 0 : index
    %c0_20 = arith.constant 0 : index
    %22 = vector.load %arg7[%c0_18, %c0_19, %c0_20] : memref<2x1x128xf32, #tpu.memory_space<vmem>>, vector<1x1x128xf32>
    %23 = vector.shape_cast %22 : vector<1x1x128xf32> to vector<1x128xf32>
    %24 = vector.broadcast %23 : vector<1x128xf32> to vector<16x128xf32>
    %25 = arith.addf %21, %24 : vector<16x128xf32>
    %26 = arith.addf %7, %25 : vector<16x128xf32>
    %cst_21 = arith.constant 0.000000e+00 : f32
    %27 = vector.broadcast %cst_21 : f32 to vector<16x128xf32>
    %28 = arith.maximumf %26, %27 : vector<16x128xf32>
    %29 = arith.truncf %28 : vector<16x128xf32> to vector<16x128xbf16>
    %c1 = arith.constant 1 : index
    %c0_22 = arith.constant 0 : index
    %c0_23 = arith.constant 0 : index
    %30 = vector.load %arg4[%c1, %c0_22, %c0_23] : memref<2x128x128xbf16, #tpu.memory_space<vmem>>, vector<1x128x128xbf16>
    %31 = vector.shape_cast %30 : vector<1x128x128xbf16> to vector<128x128xbf16>
    %cst_24 = arith.constant dense<0.000000e+00> : vector<16x128xf32>
    %32 = tpu.matmul %29, %31, %cst_24 {dimension_numbers = #tpu.dot_dimension_numbers<[1], [0], [0], [1], [0, 0, 1, 1], [], []>} : vector<16x128xbf16>, vector<128x128xbf16>, vector<16x128xf32> -> vector<16x128xf32>
    %c1_25 = arith.constant 1 : index
    %c0_26 = arith.constant 0 : index
    %c0_27 = arith.constant 0 : index
    %33 = vector.load %arg5[%c1_25, %c0_26, %c0_27] : memref<2x1x128xf32, #tpu.memory_space<vmem>>, vector<1x1x128xf32>
    %34 = vector.shape_cast %33 : vector<1x1x128xf32> to vector<1x128xf32>
    %35 = vector.broadcast %34 : vector<1x128xf32> to vector<16x128xf32>
    %36 = arith.addf %32, %35 : vector<16x128xf32>
    %cst_28 = arith.constant 0.000000e+00 : f32
    %37 = vector.broadcast %cst_28 : f32 to vector<16x128xf32>
    %38 = arith.maximumf %36, %37 : vector<16x128xf32>
    %39 = arith.truncf %38 : vector<16x128xf32> to vector<16x128xbf16>
    %c1_29 = arith.constant 1 : index
    %c0_30 = arith.constant 0 : index
    %c0_31 = arith.constant 0 : index
    %40 = vector.load %arg6[%c1_29, %c0_30, %c0_31] : memref<2x128x128xbf16, #tpu.memory_space<vmem>>, vector<1x128x128xbf16>
    %41 = vector.shape_cast %40 : vector<1x128x128xbf16> to vector<128x128xbf16>
    %cst_32 = arith.constant dense<0.000000e+00> : vector<16x128xf32>
    %42 = tpu.matmul %39, %41, %cst_32 {dimension_numbers = #tpu.dot_dimension_numbers<[1], [0], [0], [1], [0, 0, 1, 1], [], []>} : vector<16x128xbf16>, vector<128x128xbf16>, vector<16x128xf32> -> vector<16x128xf32>
    %c1_33 = arith.constant 1 : index
    %c0_34 = arith.constant 0 : index
    %c0_35 = arith.constant 0 : index
    %43 = vector.load %arg7[%c1_33, %c0_34, %c0_35] : memref<2x1x128xf32, #tpu.memory_space<vmem>>, vector<1x1x128xf32>
    %44 = vector.shape_cast %43 : vector<1x1x128xf32> to vector<1x128xf32>
    %45 = vector.broadcast %44 : vector<1x128xf32> to vector<16x128xf32>
    %46 = arith.addf %42, %45 : vector<16x128xf32>
    %47 = arith.addf %28, %46 : vector<16x128xf32>
    %cst_36 = arith.constant 0.000000e+00 : f32
    %48 = vector.broadcast %cst_36 : f32 to vector<16x128xf32>
    %49 = arith.maximumf %47, %48 : vector<16x128xf32>
    %50 = arith.truncf %49 : vector<16x128xf32> to vector<16x128xbf16>
    %c0_37 = arith.constant 0 : index
    %c0_38 = arith.constant 0 : index
    %51 = vector.load %arg8[%c0_37, %c0_38] : memref<128x128xbf16, #tpu.memory_space<vmem>>, vector<128x128xbf16>
    %cst_39 = arith.constant dense<0.000000e+00> : vector<16x128xf32>
    %52 = tpu.matmul %50, %51, %cst_39 {dimension_numbers = #tpu.dot_dimension_numbers<[1], [0], [0], [1], [0, 0, 1, 1], [], []>} : vector<16x128xbf16>, vector<128x128xbf16>, vector<16x128xf32> -> vector<16x128xf32>
    %c0_40 = arith.constant 0 : index
    %c0_41 = arith.constant 0 : index
    %53 = vector.load %arg9[%c0_40, %c0_41] : memref<1x128xf32, #tpu.memory_space<vmem>>, vector<1x128xf32>
    %54 = vector.broadcast %53 : vector<1x128xf32> to vector<16x128xf32>
    %55 = arith.addf %52, %54 : vector<16x128xf32>
    %c0_42 = arith.constant 0 : index
    %c0_43 = arith.constant 0 : index
    %56 = vector.load %arg10[%c0_42, %c0_43] : memref<16x128xf32, #tpu.memory_space<vmem>>, vector<16x128xf32>
    tpu.vector_store %arg10[%c0_42, %c0_43], %55 {strides = array<i32>} : memref<16x128xf32, #tpu.memory_space<vmem>>, vector<16x128xf32>,
    return
  }
  func.func @transform_0(%arg0: i32) -> (i32, i32) {
    %c0_i32 = arith.constant 0 : i32
    %c0_i32_0 = arith.constant 0 : i32
    return %arg0, %c0_i32 : i32, i32
  }
  func.func @transform_1(%arg0: i32) -> (i32, i32) {
    %c0_i32 = arith.constant 0 : i32
    %c0_i32_0 = arith.constant 0 : i32
    %c0_i32_1 = arith.constant 0 : i32
    return %c0_i32, %c0_i32_0 : i32, i32
  }
  func.func @transform_2(%arg0: i32) -> (i32, i32) {
    %c0_i32 = arith.constant 0 : i32
    %c0_i32_0 = arith.constant 0 : i32
    %c0_i32_1 = arith.constant 0 : i32
    return %c0_i32, %c0_i32_0 : i32, i32
  }
  func.func @transform_3(%arg0: i32) -> (i32, i32, i32) {
    %c0_i32 = arith.constant 0 : i32
    %c0_i32_0 = arith.constant 0 : i32
    %c0_i32_1 = arith.constant 0 : i32
    %c0_i32_2 = arith.constant 0 : i32
    return %c0_i32, %c0_i32_0, %c0_i32_1 : i32, i32, i32
  }
  func.func @transform_4(%arg0: i32) -> (i32, i32, i32) {
    %c0_i32 = arith.constant 0 : i32
    %c0_i32_0 = arith.constant 0 : i32
    %c0_i32_1 = arith.constant 0 : i32
    %c0_i32_2 = arith.constant 0 : i32
    return %c0_i32, %c0_i32_0, %c0_i32_1 : i32, i32, i32
  }
  func.func @transform_5(%arg0: i32) -> (i32, i32, i32) {
    %c0_i32 = arith.constant 0 : i32
    %c0_i32_0 = arith.constant 0 : i32
    %c0_i32_1 = arith.constant 0 : i32
    %c0_i32_2 = arith.constant 0 : i32
    return %c0_i32, %c0_i32_0, %c0_i32_1 : i32, i32, i32
  }
  func.func @transform_6(%arg0: i32) -> (i32, i32, i32) {
    %c0_i32 = arith.constant 0 : i32
    %c0_i32_0 = arith.constant 0 : i32
    %c0_i32_1 = arith.constant 0 : i32
    %c0_i32_2 = arith.constant 0 : i32
    return %c0_i32, %c0_i32_0, %c0_i32_1 : i32, i32, i32
  }
  func.func @transform_7(%arg0: i32) -> (i32, i32) {
    %c0_i32 = arith.constant 0 : i32
    %c0_i32_0 = arith.constant 0 : i32
    %c0_i32_1 = arith.constant 0 : i32
    return %c0_i32, %c0_i32_0 : i32, i32
  }
  func.func @transform_8(%arg0: i32) -> (i32, i32) {
    %c0_i32 = arith.constant 0 : i32
    %c0_i32_0 = arith.constant 0 : i32
    %c0_i32_1 = arith.constant 0 : i32
    return %c0_i32, %c0_i32_0 : i32, i32
  }
  func.func @transform_9(%arg0: i32) -> (i32, i32) {
    %c0_i32 = arith.constant 0 : i32
    %c0_i32_0 = arith.constant 0 : i32
    return %arg0, %c0_i32 : i32, i32
  }
}

module attributes {stable_mosaic.version = 11 : i64} {
  func.func @resfc_resident_kernel(%arg0: i32, %arg1: memref<16x128xbf16, #tpu.memory_space<vmem>>, %arg2: memref<128x128xbf16, #tpu.memory_space<vmem>>, %arg3: memref<1x128xf32, #tpu.memory_space<vmem>>, %arg4: memref<2x128x128xbf16, #tpu.memory_space<vmem>>, %arg5: memref<2x1x128xf32, #tpu.memory_space<vmem>>, %arg6: memref<2x128x128xbf16, #tpu.memory_space<vmem>>, %arg7: memref<2x1x128xf32, #tpu.memory_space<vmem>>, %arg8: memref<128x128xbf16, #tpu.memory_space<vmem>>, %arg9: memref<1x128xf32, #tpu.memory_space<vmem>>, %arg10: memref<16x128xf32, #tpu.memory_space<vmem>>) attributes {dimension_semantics = [#tpu.dimension_semantics<parallel>], iteration_bounds = array<i64: 1>, scalar_prefetch = 0 : i64, scratch_operands = 0 : i64, tpu.core_type = #tpu.core_type<tc>, window_params = [{transform_indices = @transform_0, window_bounds = array<i64: 16, 128>}, {pipeline_mode = #tpu.pipeline_mode<synchronous>, transform_indices = @transform_1, window_bounds = array<i64: 128, 128>}, {pipeline_mode = #tpu.pipeline_mode<synchronous>, transform_indices = @transform_2, window_bounds = array<i64: 1, 128>}, {pipeline_mode = #tpu.pipeline_mode<synchronous>, transform_indices = @transform_3, window_bounds = array<i64: 2, 128, 128>}, {pipeline_mode = #tpu.pipeline_mode<synchronous>, transform_indices = @transform_4, window_bounds = array<i64: 2, 1, 128>}, {pipeline_mode = #tpu.pipeline_mode<synchronous>, transform_indices = @transform_5, window_bounds = array<i64: 2, 128, 128>}, {pipeline_mode = #tpu.pipeline_mode<synchronous>, transform_indices = @transform_6, window_bounds = array<i64: 2, 1, 128>}, {pipeline_mode = #tpu.pipeline_mode<synchronous>, transform_indices = @transform_7, window_bounds = array<i64: 128, 128>}, {pipeline_mode = #tpu.pipeline_mode<synchronous>, transform_indices = @transform_8, window_bounds = array<i64: 1, 128>}, {transform_indices = @transform_9, window_bounds = array<i64: 16, 128>}]} {
    %c0 = arith.constant 0 : index
    %c0_0 = arith.constant 0 : index
    %0 = vector.load %arg1[%c0, %c0_0] : memref<16x128xbf16, #tpu.memory_space<vmem>>, vector<16x128xbf16>
    %c0_1 = arith.constant 0 : index
    %c0_2 = arith.constant 0 : index
    %1 = vector.load %arg2[%c0_1, %c0_2] : memref<128x128xbf16, #tpu.memory_space<vmem>>, vector<128x128xbf16>
    %cst = arith.constant dense<0.000000e+00> : vector<16x128xf32>
    %2 = tpu.matmul %0, %1, %cst {dimension_numbers = #tpu.dot_dimension_numbers<[1], [0], [0], [1], [0, 0, 1, 1], [], []>} : vector<16x128xbf16>, vector<128x128xbf16>, vector<16x128xf32> -> vector<16x128xf32>
    %c0_3 = arith.constant 0 : index
    %c0_4 = arith.constant 0 : index
    %3 = vector.load %arg3[%c0_3, %c0_4] : memref<1x128xf32, #tpu.memory_space<vmem>>, vector<1x128xf32>
    %4 = vector.broadcast %3 : vector<1x128xf32> to vector<16x128xf32>
    %5 = arith.addf %2, %4 : vector<16x128xf32>
    %cst_5 = arith.constant 0.000000e+00 : f32
    %6 = vector.broadcast %cst_5 : f32 to vector<16x128xf32>
    %7 = arith.maximumf %5, %6 : vector<16x128xf32>
    %8 = arith.truncf %7 : vector<16x128xf32> to vector<16x128xbf16>
    %c0_6 = arith.constant 0 : index
    %c0_7 = arith.constant 0 : index
    %c0_8 = arith.constant 0 : index
    %9 = vector.load %arg4[%c0_6, %c0_7, %c0_8] : memref<2x128x128xbf16, #tpu.memory_space<vmem>>, vector<1x128x128xbf16>
    %10 = vector.shape_cast %9 : vector<1x128x128xbf16> to vector<128x128xbf16>
    %cst_9 = arith.constant dense<0.000000e+00> : vector<16x128xf32>
    %11 = tpu.matmul %8, %10, %cst_9 {dimension_numbers = #tpu.dot_dimension_numbers<[1], [0], [0], [1], [0, 0, 1, 1], [], []>} : vector<16x128xbf16>, vector<128x128xbf16>, vector<16x128xf32> -> vector<16x128xf32>
    %c0_10 = arith.constant 0 : index
    %c0_11 = arith.constant 0 : index
    %c0_12 = arith.constant 0 : index
    %12 = vector.load %arg5[%c0_10, %c0_11, %c0_12] : memref<2x1x128xf32, #tpu.memory_space<vmem>>, vector<1x1x128xf32>
    %13 = vector.shape_cast %12 : vector<1x1x128xf32> to vector<1x128xf32>
    %14 = vector.broadcast %13 : vector<1x128xf32> to vector<16x128xf32>
    %15 = arith.addf %11, %14 : vector<16x128xf32>
    %cst_13 = arith.constant 0.000000e+00 : f32
    %16 = vector.broadcast %cst_13 : f32 to vector<16x128xf32>
    %17 = arith.maximumf %15, %16 : vector<16x128xf32>
    %18 = arith.truncf %17 : vector<16x128xf32> to vector<16x128xbf16>
    %c0_14 = arith.constant 0 : index
    %c0_15 = arith.constant 0 : index
    %c0_16 = arith.constant 0 : index
    %19 = vector.load %arg6[%c0_14, %c0_15, %c0_16] : memref<2x128x128xbf16, #tpu.memory_space<vmem>>, vector<1x128x128xbf16>
    %20 = vector.shape_cast %19 : vector<1x128x128xbf16> to vector<128x128xbf16>
    %cst_17 = arith.constant dense<0.000000e+00> : vector<16x128xf32>
    %21 = tpu.matmul %18, %20, %cst_17 {dimension_numbers = #tpu.dot_dimension_numbers<[1], [0], [0], [1], [0, 0, 1, 1], [], []>} : vector<16x128xbf16>, vector<128x128xbf16>, vector<16x128xf32> -> vector<16x128xf32>
    %c0_18 = arith.constant 0 : index
    %c0_19 = arith.constant 0 : index
    %c0_20 = arith.constant 0 : index
    %22 = vector.load %arg7[%c0_18, %c0_19, %c0_20] : memref<2x1x128xf32, #tpu.memory_space<vmem>>, vector<1x1x128xf32>
    %23 = vector.shape_cast %22 : vector<1x1x128xf32> to vector<1x128xf32>
    %24 = vector.broadcast %23 : vector<1x128xf32> to vector<16x128xf32>
    %25 = arith.addf %21, %24 : vector<16x128xf32>
    %26 = arith.addf %7, %25 : vector<16x128xf32>
    %cst_21 = arith.constant 0.000000e+00 : f32
    %27 = vector.broadcast %cst_21 : f32 to vector<16x128xf32>
    %28 = arith.maximumf %26, %27 : vector<16x128xf32>
    %29 = arith.truncf %28 : vector<16x128xf32> to vector<16x128xbf16>
    %c1 = arith.constant 1 : index
    %c0_22 = arith.constant 0 : index
    %c0_23 = arith.constant 0 : index
    %30 = vector.load %arg4[%c1, %c0_22, %c0_23] : memref<2x128x128xbf16, #tpu.memory_space<vmem>>, vector<1x128x128xbf16>
    %31 = vector.shape_cast %30 : vector<1x128x128xbf16> to vector<128x128xbf16>
    %cst_24 = arith.constant dense<0.000000e+00> : vector<16x128xf32>
    %32 = tpu.matmul %29, %31, %cst_24 {dimension_numbers = #tpu.dot_dimension_numbers<[1], [0], [0], [1], [0, 0, 1, 1], [], []>} : vector<16x128xbf16>, vector<128x128xbf16>, vector<16x128xf32> -> vector<16x128xf32>
    %c1_25 = arith.constant 1 : index
    %c0_26 = arith.constant 0 : index
    %c0_27 = arith.constant 0 : index
    %33 = vector.load %arg5[%c1_25, %c0_26, %c0_27] : memref<2x1x128xf32, #tpu.memory_space<vmem>>, vector<1x1x128xf32>
    %34 = vector.shape_cast %33 : vector<1x1x128xf32> to vector<1x128xf32>
    %35 = vector.broadcast %34 : vector<1x128xf32> to vector<16x128xf32>
    %36 = arith.addf %32, %35 : vector<16x128xf32>
    %cst_28 = arith.constant 0.000000e+00 : f32
    %37 = vector.broadcast %cst_28 : f32 to vector<16x128xf32>
    %38 = arith.maximumf %36, %37 : vector<16x128xf32>
    %39 = arith.truncf %38 : vector<16x128xf32> to vector<16x128xbf16>
    %c1_29 = arith.constant 1 : index
    %c0_30 = arith.constant 0 : index
    %c0_31 = arith.constant 0 : index
    %40 = vector.load %arg6[%c1_29, %c0_30, %c0_31] : memref<2x128x128xbf16, #tpu.memory_space<vmem>>, vector<1x128x128xbf16>
    %41 = vector.shape_cast %40 : vector<1x128x128xbf16> to vector<128x128xbf16>
    %cst_32 = arith.constant dense<0.000000e+00> : vector<16x128xf32>
    %42 = tpu.matmul %39, %41, %cst_32 {dimension_numbers = #tpu.dot_dimension_numbers<[1], [0], [0], [1], [0, 0, 1, 1], [], []>} : vector<16x128xbf16>, vector<128x128xbf16>, vector<16x128xf32> -> vector<16x128xf32>
    %c1_33 = arith.constant 1 : index
    %c0_34 = arith.constant 0 : index
    %c0_35 = arith.constant 0 : index
    %43 = vector.load %arg7[%c1_33, %c0_34, %c0_35] : memref<2x1x128xf32, #tpu.memory_space<vmem>>, vector<1x1x128xf32>
    %44 = vector.shape_cast %43 : vector<1x1x128xf32> to vector<1x128xf32>
    %45 = vector.broadcast %44 : vector<1x128xf32> to vector<16x128xf32>
    %46 = arith.addf %42, %45 : vector<16x128xf32>
    %47 = arith.addf %28, %46 : vector<16x128xf32>
    %cst_36 = arith.constant 0.000000e+00 : f32
    %48 = vector.broadcast %cst_36 : f32 to vector<16x128xf32>
    %49 = arith.maximumf %47, %48 : vector<16x128xf32>
    %50 = arith.truncf %49 : vector<16x128xf32> to vector<16x128xbf16>
    %c0_37 = arith.constant 0 : index
    %c0_38 = arith.constant 0 : index
    %51 = vector.load %arg8[%c0_37, %c0_38] : memref<128x128xbf16, #tpu.memory_space<vmem>>, vector<128x128xbf16>
    %cst_39 = arith.constant dense<0.000000e+00> : vector<16x128xf32>
    %52 = tpu.matmul %50, %51, %cst_39 {dimension_numbers = #tpu.dot_dimension_numbers<[1], [0], [0], [1], [0, 0, 1, 1], [], []>} : vector<16x128xbf16>, vector<128x128xbf16>, vector<16x128xf32> -> vector<16x128xf32>
    %c0_40 = arith.constant 0 : index
    %c0_41 = arith.constant 0 : index
    %53 = vector.load %arg9[%c0_40, %c0_41] : memref<1x128xf32, #tpu.memory_space<vmem>>, vector<1x128xf32>
    %54 = vector.broadcast %53 : vector<1x128xf32> to vector<16x128xf32>
    %55 = arith.addf %52, %54 : vector<16x128xf32>
    %c0_42 = arith.constant 0 : index
    %c0_43 = arith.constant 0 : index
    %56 = vector.load %arg10[%c0_42, %c0_43] : memref<16x128xf32, #tpu.memory_space<vmem>>, vector<16x128xf32>
    tpu.vector_store %arg10[%c0_42, %c0_43], %55 {strides = array<i32>} : memref<16x128xf32, #tpu.memory_space<vmem>>, vector<16x128xf32>,
    return
  }
  func.func @transform_0(%arg0: i32) -> (i32, i32) {
    %c0_i32 = arith.constant 0 : i32
    %c0_i32_0 = arith.constant 0 : i32
    return %arg0, %c0_i32 : i32, i32
  }
  func.func @transform_1(%arg0: i32) -> (i32, i32) {
    %c0_i32 = arith.constant 0 : i32
    %c0_i32_0 = arith.constant 0 : i32
    %c0_i32_1 = arith.constant 0 : i32
    return %c0_i32, %c0_i32_0 : i32, i32
  }
  func.func @transform_2(%arg0: i32) -> (i32, i32) {
    %c0_i32 = arith.constant 0 : i32
    %c0_i32_0 = arith.constant 0 : i32
    %c0_i32_1 = arith.constant 0 : i32
    return %c0_i32, %c0_i32_0 : i32, i32
  }
  func.func @transform_3(%arg0: i32) -> (i32, i32, i32) {
    %c0_i32 = arith.constant 0 : i32
    %c0_i32_0 = arith.constant 0 : i32
    %c0_i32_1 = arith.constant 0 : i32
    %c0_i32_2 = arith.constant 0 : i32
    return %c0_i32, %c0_i32_0, %c0_i32_1 : i32, i32, i32
  }
  func.func @transform_4(%arg0: i32) -> (i32, i32, i32) {
    %c0_i32 = arith.constant 0 : i32
    %c0_i32_0 = arith.constant 0 : i32
    %c0_i32_1 = arith.constant 0 : i32
    %c0_i32_2 = arith.constant 0 : i32
    return %c0_i32, %c0_i32_0, %c0_i32_1 : i32, i32, i32
  }
  func.func @transform_5(%arg0: i32) -> (i32, i32, i32) {
    %c0_i32 = arith.constant 0 : i32
    %c0_i32_0 = arith.constant 0 : i32
    %c0_i32_1 = arith.constant 0 : i32
    %c0_i32_2 = arith.constant 0 : i32
    return %c0_i32, %c0_i32_0, %c0_i32_1 : i32, i32, i32
  }
  func.func @transform_6(%arg0: i32) -> (i32, i32, i32) {
    %c0_i32 = arith.constant 0 : i32
    %c0_i32_0 = arith.constant 0 : i32
    %c0_i32_1 = arith.constant 0 : i32
    %c0_i32_2 = arith.constant 0 : i32
    return %c0_i32, %c0_i32_0, %c0_i32_1 : i32, i32, i32
  }
  func.func @transform_7(%arg0: i32) -> (i32, i32) {
    %c0_i32 = arith.constant 0 : i32
    %c0_i32_0 = arith.constant 0 : i32
    %c0_i32_1 = arith.constant 0 : i32
    return %c0_i32, %c0_i32_0 : i32, i32
  }
  func.func @transform_8(%arg0: i32) -> (i32, i32) {
    %c0_i32 = arith.constant 0 : i32
    %c0_i32_0 = arith.constant 0 : i32
    %c0_i32_1 = arith.constant 0 : i32
    return %c0_i32, %c0_i32_0 : i32, i32
  }
  func.func @transform_9(%arg0: i32) -> (i32, i32) {
    %c0_i32 = arith.constant 0 : i32
    %c0_i32_0 = arith.constant 0 : i32
    return %arg0, %c0_i32 : i32, i32
  }
}

</mosaic_0001>

<llo_original>
// kernel: residual_fc_forward.1
$region0: #{residual_fc_forward.1}
  #allocation0 [shape = 'u32[]', space=smem, size = 0x4, offset = 0x4, fixed_abs, tag = 'smem constant byte address 0x4 - core index']
  #allocation1 [shape = 'u32[144,128]{1,0:T(1,128)}', space=vmem, size = 0x12000, scoped, tag = 'internal scratch']
  %s0 = inlined_call_operand.vmem [shape: bf16[16,128], index: 0, kind: input, shape index: {}]
  %s1 = inlined_call_operand.hbm [shape: bf16[128,128], index: 1, kind: input, shape index: {}]
  %s2 = inlined_call_operand.vmem [shape: f32[1,128], index: 2, kind: input, shape index: {}]
  %s3 = inlined_call_operand.hbm [shape: bf16[2,128,128], index: 3, kind: input, shape index: {}]
  %s4 = inlined_call_operand.vmem [shape: f32[2,1,128], index: 4, kind: input, shape index: {}]
  %s5 = inlined_call_operand.hbm [shape: bf16[2,128,128], index: 5, kind: input, shape index: {}]
  %s6 = inlined_call_operand.vmem [shape: f32[2,1,128], index: 6, kind: input, shape index: {}]
  %s7 = inlined_call_operand.hbm [shape: bf16[128,128], index: 7, kind: input, shape index: {}]
  %s8 = inlined_call_operand.vmem [shape: f32[1,128], index: 8, kind: input, shape index: {}]
  %s9 = inlined_call_operand.vmem [shape: f32[16,128], index: 9, kind: output, shape index: {}]
  %s10 = sld [smem:[#allocation0]]
  $region62: #{residual_fc_forward.1} parent=0
    _
  %s12 = ssub.s32 1, %s10
  %s13 = scalar_select 0, %s12, %s10
  $region1: #{residual_fc_forward.1} parent=0
    #allocation2 [shape = 'u8[32768]{0}', space=vmem, size = 0x8000, scoped, tag = 'input window, operand 1, single buffered']
    #allocation3 [shape = 's32[1]{0}', space=sflag, size = 0x4, scoped, tag = 'scoped memory for residual_fc_forward.1']
    #allocation4 [shape = 'u8[65536]{0}', space=vmem, size = 0x10000, scoped, tag = 'input window, operand 3, single buffered']
    #allocation5 [shape = 's32[1]{0}', space=sflag, size = 0x4, scoped, tag = 'scoped memory for residual_fc_forward.1']
    #allocation6 [shape = 'u8[65536]{0}', space=vmem, size = 0x10000, scoped, tag = 'input window, operand 5, single buffered']
    #allocation7 [shape = 'u8[32768]{0}', space=vmem, size = 0x8000, scoped, tag = 'input window, operand 7, single buffered']
    #allocation8 [shape = 's32[1]{0}', space=sflag, size = 0x4, scoped, tag = 'scoped memory for residual_fc_forward.1']
    %14 = vsyncpa [#allocation3], 0
    %15 = vsyncpa [#allocation5], 0
    %16 = vsyncpa [#allocation8], 0
    // Predicated region
    $region2: #{residual_fc_forward.1} parent=1 // pred_check
      _
    $region3: #{residual_fc_forward.1} parent=1 // pred_check_branch
      %18 = sbr.rel (0) target = $region5
    $region4: #{residual_fc_forward.1} parent=1 // pred_region
      _
    $region5: #{residual_fc_forward.1} parent=1 // pred_fallthru
      _
    // Predicated region
    $region6: #{residual_fc_forward.1} parent=1 // pred_check
      _
    $region7: #{residual_fc_forward.1} parent=1 // pred_check_branch
      %20 = sbr.rel (0) target = $region9
    $region8: #{residual_fc_forward.1} parent=1 // pred_region
      %s22 = ssub.s32 1024, 1024
      %23 = vsyncadd [#allocation3], %s22
      %s24 = sshll.u32 [#allocation2], 4
      %s25 = int_to_ptr.vmem [resolvable:$true] %s24
      %30 = dma.hbm_to_vmem [thread:$0]  %s1, 1024, %s25, [#allocation3], 64, 64, 4
    $region9: #{residual_fc_forward.1} parent=1 // pred_fallthru
      _
    // Predicated region
    $region10: #{residual_fc_forward.1} parent=1 // pred_check
      _
    $region11: #{residual_fc_forward.1} parent=1 // pred_check_branch
      %32 = sbr.rel (0) target = $region13
    $region12: #{residual_fc_forward.1} parent=1 // pred_region
      _
    $region13: #{residual_fc_forward.1} parent=1 // pred_fallthru
      _
    // Predicated region
    $region14: #{residual_fc_forward.1} parent=1 // pred_check
      _
    $region15: #{residual_fc_forward.1} parent=1 // pred_check_branch
      %34 = sbr.rel (0) target = $region17
    $region16: #{residual_fc_forward.1} parent=1 // pred_region
      %s36 = ssub.s32 2048, 2048
      %37 = vsyncadd [#allocation5], %s36
      %s38 = sshll.u32 [#allocation4], 4
      %s39 = int_to_ptr.vmem [resolvable:$true] %s38
      %44 = dma.hbm_to_vmem [thread:$0]  %s3, 2048, %s39, [#allocation5], 64, 64, 4
    $region17: #{residual_fc_forward.1} parent=1 // pred_fallthru
      _
    // Predicated region
    $region18: #{residual_fc_forward.1} parent=1 // pred_check
      _
    $region19: #{residual_fc_forward.1} parent=1 // pred_check_branch
      %46 = sbr.rel (0) target = $region21
    $region20: #{residual_fc_forward.1} parent=1 // pred_region
      _
    $region21: #{residual_fc_forward.1} parent=1 // pred_fallthru
      _
    // Predicated region
    $region22: #{residual_fc_forward.1} parent=1 // pred_check
      _
    $region23: #{residual_fc_forward.1} parent=1 // pred_check_branch
      %48 = sbr.rel (0) target = $region25
    $region24: #{residual_fc_forward.1} parent=1 // pred_region
      %s50 = ssub.s32 2048, 2048
      %51 = vsyncadd [#allocation5], %s50
      %s52 = sshll.u32 [#allocation6], 4
      %s53 = int_to_ptr.vmem [resolvable:$true] %s52
      %58 = dma.hbm_to_vmem [thread:$0]  %s5, 2048, %s53, [#allocation5], 64, 64, 4
    $region25: #{residual_fc_forward.1} parent=1 // pred_fallthru
      _
    // Predicated region
    $region26: #{residual_fc_forward.1} parent=1 // pred_check
      _
    $region27: #{residual_fc_forward.1} parent=1 // pred_check_branch
      %60 = sbr.rel (0) target = $region29
    $region28: #{residual_fc_forward.1} parent=1 // pred_region
      _
    $region29: #{residual_fc_forward.1} parent=1 // pred_fallthru
      _
    // Predicated region
    $region30: #{residual_fc_forward.1} parent=1 // pred_check
      _
    $region31: #{residual_fc_forward.1} parent=1 // pred_check_branch
      %62 = sbr.rel (0) target = $region33
    $region32: #{residual_fc_forward.1} parent=1 // pred_region
      %s64 = ssub.s32 1024, 1024
      %65 = vsyncadd [#allocation8], %s64
      %s66 = sshll.u32 [#allocation7], 4
      %s67 = int_to_ptr.vmem [resolvable:$true] %s66
      %72 = dma.hbm_to_vmem [thread:$0]  %s7, 1024, %s67, [#allocation8], 64, 64, 4
    $region33: #{residual_fc_forward.1} parent=1 // pred_fallthru
      _
    // Predicated region
    $region34: #{residual_fc_forward.1} parent=1 // pred_check
      _
    $region35: #{residual_fc_forward.1} parent=1 // pred_check_branch
      %74 = sbr.rel (0) target = $region37
    $region36: #{residual_fc_forward.1} parent=1 // pred_region
      _
    $region37: #{residual_fc_forward.1} parent=1 // pred_fallthru
      _
    // Predicated region
    $region38: #{residual_fc_forward.1} parent=1 // pred_check
      _
    $region39: #{residual_fc_forward.1} parent=1 // pred_check_branch
      %76 = sbr.rel (0) target = $region41
    $region40: #{residual_fc_forward.1} parent=1 // pred_region
      %77 = dma.done [#allocation3], 1024
    $region41: #{residual_fc_forward.1} parent=1 // pred_fallthru
      _
    // Predicated region
    $region42: #{residual_fc_forward.1} parent=1 // pred_check
      _
    $region43: #{residual_fc_forward.1} parent=1 // pred_check_branch
      %79 = sbr.rel (0) target = $region45
    $region44: #{residual_fc_forward.1} parent=1 // pred_region
      %80 = dma.done [#allocation5], 2048
    $region45: #{residual_fc_forward.1} parent=1 // pred_fallthru
      _
    // Predicated region
    $region46: #{residual_fc_forward.1} parent=1 // pred_check
      _
    $region47: #{residual_fc_forward.1} parent=1 // pred_check_branch
      %82 = sbr.rel (0) target = $region49
    $region48: #{residual_fc_forward.1} parent=1 // pred_region
      %83 = dma.done [#allocation5], 2048
    $region49: #{residual_fc_forward.1} parent=1 // pred_fallthru
      _
    // Predicated region
    $region50: #{residual_fc_forward.1} parent=1 // pred_check
      _
    $region51: #{residual_fc_forward.1} parent=1 // pred_check_branch
      %85 = sbr.rel (0) target = $region53
    $region52: #{residual_fc_forward.1} parent=1 // pred_region
      %86 = dma.done [#allocation8], 1024
    $region53: #{residual_fc_forward.1} parent=1 // pred_fallthru
      _
    %v88 = vld [vmem:[%s0] sm:$0xf]
    %v89 = vld [vmem:[%s0 + $0x4] sm:$0xf]
    %v90 = vld [vmem:[#allocation2] sm:$0xf]
    %v91 = vld [vmem:[#allocation2 + $0x4] sm:$0xf]
    %v92 = vld [vmem:[#allocation2 + $0x8] sm:$0xf]
    %v93 = vld [vmem:[#allocation2 + $0xc] sm:$0xf]
    %v94 = vld [vmem:[#allocation2 + $0x10] sm:$0xf]
    %v95 = vld [vmem:[#allocation2 + $0x14] sm:$0xf]
    %v96 = vld [vmem:[#allocation2 + $0x18] sm:$0xf]
    %v97 = vld [vmem:[#allocation2 + $0x1c] sm:$0xf]
    %v98 = vld [vmem:[#allocation2 + $0x20] sm:$0xf]
    %v99 = vld [vmem:[#allocation2 + $0x24] sm:$0xf]
    %v100 = vld [vmem:[#allocation2 + $0x28] sm:$0xf]
    %v101 = vld [vmem:[#allocation2 + $0x2c] sm:$0xf]
    %v102 = vld [vmem:[#allocation2 + $0x30] sm:$0xf]
    %v103 = vld [vmem:[#allocation2 + $0x34] sm:$0xf]
    %v104 = vld [vmem:[#allocation2 + $0x38] sm:$0xf]
    %v105 = vld [vmem:[#allocation2 + $0x3c] sm:$0xf]
    %v106 = vld [vmem:[%s2] sm:$0x1]
    %v108 = vlaneseq
    %v109 = vshrl.u32 %v108, 7
    %v110 = vsub.s32 0, %v109
    %v111 = vrot.slane %v106, %v110
    %v115 = vunpack.c.l.b16 %v88
    %v116 = vunpack.c.l.b16 %v89
    %v117 = vpack.c.b16 %v116, %v115
    %v135 = vunpack.c.l.b16 %v90
    %v136 = vunpack.c.l.b16 %v91
    %v137 = vunpack.c.l.b16 %v92
    %v138 = vunpack.c.l.b16 %v93
    %v139 = vunpack.c.l.b16 %v94
    %v140 = vunpack.c.l.b16 %v95
    %v141 = vunpack.c.l.b16 %v96
    %v142 = vunpack.c.l.b16 %v97
    %v143 = vunpack.c.l.b16 %v98
    %v144 = vunpack.c.l.b16 %v99
    %v145 = vunpack.c.l.b16 %v100
    %v146 = vunpack.c.l.b16 %v101
    %v147 = vunpack.c.l.b16 %v102
    %v148 = vunpack.c.l.b16 %v103
    %v149 = vunpack.c.l.b16 %v104
    %v150 = vunpack.c.l.b16 %v105
    %v151 = vpack.c.b16 %v136, %v135
    %v152 = vpack.c.b16 %v138, %v137
    %v153 = vpack.c.b16 %v140, %v139
    %v154 = vpack.c.b16 %v142, %v141
    %v155 = vpack.c.b16 %v144, %v143
    %v156 = vpack.c.b16 %v146, %v145
    %v157 = vpack.c.b16 %v148, %v147
    %v158 = vpack.c.b16 %v150, %v149
    %167 = vmatprep.subr.bf16.mxu0 0
    %168 = vmatpush1.bf16.msra.mxu0 %v151
    %169 = vmatprep.subr.bf16.mxu0 0
    %170 = vmatpush1.bf16.msra.mxu0 %v152
    %171 = vmatprep.subr.bf16.mxu0 0
    %172 = vmatpush1.bf16.msra.mxu0 %v153
    %173 = vmatprep.subr.bf16.mxu0 0
    %174 = vmatpush1.bf16.msra.mxu0 %v154
    %175 = vmatprep.subr.bf16.mxu0 0
    %176 = vmatpush1.bf16.msra.mxu0 %v155
    %177 = vmatprep.subr.bf16.mxu0 0
    %178 = vmatpush1.bf16.msra.mxu0 %v156
    %179 = vmatprep.subr.bf16.mxu0 0
    %180 = vmatpush1.bf16.msra.mxu0 %v157
    %181 = vmatprep.subr.bf16.mxu0 0
    %182 = vmatpush1.bf16.msra.mxu0 %v158
    %183 = vmatprep.subr.bf16.mxu0 0
    %184 = vmatpush1.bf16.msra.mxu0 0
    %185 = vmatprep.subr.bf16.mxu0 0
    %186 = vmatpush1.bf16.msra.mxu0 0
    %187 = vmatprep.subr.bf16.mxu0 0
    %188 = vmatpush1.bf16.msra.mxu0 0
    %189 = vmatprep.subr.bf16.mxu0 0
    %190 = vmatpush1.bf16.msra.mxu0 0
    %191 = vmatprep.subr.bf16.mxu0 0
    %192 = vmatpush1.bf16.msra.mxu0 0
    %193 = vmatprep.subr.bf16.mxu0 0
    %194 = vmatpush1.bf16.msra.mxu0 0
    %195 = vmatprep.subr.bf16.mxu0 0
    %196 = vmatpush1.bf16.msra.mxu0 0
    %197 = vmatprep.subr.bf16.mxu0 0
    %198 = vmatpush1.bf16.msra.mxu0 0
    %199 = vmatprep.mubr.bf16.mxu0 0
    %200 = vmatmul.mubr.bf16.gmra.mrb[0].mxu0 %v117
    %v201 = vpop.f32.mrb[0].mxu0
    %v202 = vadd.f32 %v111, %v201
    %v203 = vpop.f32.mrb[0].mxu0
    %v204 = vpop.f32.mrb[0].mxu0
    %v205 = vadd.f32 %v111, %v204
    %v206 = vpop.f32.mrb[0].mxu0
    %207 = vdwg.mxu0
    %v208 = vmax.f32 %v202, 0.0
    %v209 = vmax.f32 %v205, 0.0
    %v210 = vpack.c.bf16 %v209, %v208
    %v211 = vld [vmem:[#allocation4] sm:$0xf]
    %v212 = vld [vmem:[#allocation4 + $0x4] sm:$0xf]
    %v213 = vld [vmem:[#allocation4 + $0x8] sm:$0xf]
    %v214 = vld [vmem:[#allocation4 + $0xc] sm:$0xf]
    %v215 = vld [vmem:[#allocation4 + $0x10] sm:$0xf]
    %v216 = vld [vmem:[#allocation4 + $0x14] sm:$0xf]
    %v217 = vld [vmem:[#allocation4 + $0x18] sm:$0xf]
    %v218 = vld [vmem:[#allocation4 + $0x1c] sm:$0xf]
    %v219 = vld [vmem:[#allocation4 + $0x20] sm:$0xf]
    %v220 = vld [vmem:[#allocation4 + $0x24] sm:$0xf]
    %v221 = vld [vmem:[#allocation4 + $0x28] sm:$0xf]
    %v222 = vld [vmem:[#allocation4 + $0x2c] sm:$0xf]
    %v223 = vld [vmem:[#allocation4 + $0x30] sm:$0xf]
    %v224 = vld [vmem:[#allocation4 + $0x34] sm:$0xf]
    %v225 = vld [vmem:[#allocation4 + $0x38] sm:$0xf]
    %v226 = vld [vmem:[#allocation4 + $0x3c] sm:$0xf]
    %v227 = vld [vmem:[%s4] sm:$0x1]
    %v229 = vlaneseq
    %v230 = vshrl.u32 %v229, 7
    %v231 = vsub.s32 0, %v230
    %v232 = vrot.slane %v227, %v231
    %v250 = vunpack.c.l.b16 %v211
    %v251 = vunpack.c.l.b16 %v212
    %v252 = vunpack.c.l.b16 %v213
    %v253 = vunpack.c.l.b16 %v214
    %v254 = vunpack.c.l.b16 %v215
    %v255 = vunpack.c.l.b16 %v216
    %v256 = vunpack.c.l.b16 %v217
    %v257 = vunpack.c.l.b16 %v218
    %v258 = vunpack.c.l.b16 %v219
    %v259 = vunpack.c.l.b16 %v220
    %v260 = vunpack.c.l.b16 %v221
    %v261 = vunpack.c.l.b16 %v222
    %v262 = vunpack.c.l.b16 %v223
    %v263 = vunpack.c.l.b16 %v224
    %v264 = vunpack.c.l.b16 %v225
    %v265 = vunpack.c.l.b16 %v226
    %v266 = vpack.c.b16 %v251, %v250
    %v267 = vpack.c.b16 %v253, %v252
    %v268 = vpack.c.b16 %v255, %v254
    %v269 = vpack.c.b16 %v257, %v256
    %v270 = vpack.c.b16 %v259, %v258
    %v271 = vpack.c.b16 %v261, %v260
    %v272 = vpack.c.b16 %v263, %v262
    %v273 = vpack.c.b16 %v265, %v264
    %282 = vmatprep.subr.bf16.mxu0 0
    %283 = vmatpush1.bf16.msra.mxu0 %v266
    %284 = vmatprep.subr.bf16.mxu0 0
    %285 = vmatpush1.bf16.msra.mxu0 %v267
    %286 = vmatprep.subr.bf16.mxu0 0
    %287 = vmatpush1.bf16.msra.mxu0 %v268
    %288 = vmatprep.subr.bf16.mxu0 0
    %289 = vmatpush1.bf16.msra.mxu0 %v269
    %290 = vmatprep.subr.bf16.mxu0 0
    %291 = vmatpush1.bf16.msra.mxu0 %v270
    %292 = vmatprep.subr.bf16.mxu0 0
    %293 = vmatpush1.bf16.msra.mxu0 %v271
    %294 = vmatprep.subr.bf16.mxu0 0
    %295 = vmatpush1.bf16.msra.mxu0 %v272
    %296 = vmatprep.subr.bf16.mxu0 0
    %297 = vmatpush1.bf16.msra.mxu0 %v273
    %298 = vmatprep.subr.bf16.mxu0 0
    %299 = vmatpush1.bf16.msra.mxu0 0
    %300 = vmatprep.subr.bf16.mxu0 0
    %301 = vmatpush1.bf16.msra.mxu0 0
    %302 = vmatprep.subr.bf16.mxu0 0
    %303 = vmatpush1.bf16.msra.mxu0 0
    %304 = vmatprep.subr.bf16.mxu0 0
    %305 = vmatpush1.bf16.msra.mxu0 0
    %306 = vmatprep.subr.bf16.mxu0 0
    %307 = vmatpush1.bf16.msra.mxu0 0
    %308 = vmatprep.subr.bf16.mxu0 0
    %309 = vmatpush1.bf16.msra.mxu0 0
    %310 = vmatprep.subr.bf16.mxu0 0
    %311 = vmatpush1.bf16.msra.mxu0 0
    %312 = vmatprep.subr.bf16.mxu0 0
    %313 = vmatpush1.bf16.msra.mxu0 0
    %314 = vmatprep.mubr.bf16.mxu0 0
    %315 = vmatmul.mubr.bf16.gmra.mrb[0].mxu0 %v210
    %v316 = vpop.f32.mrb[0].mxu0
    %v317 = vadd.f32 %v232, %v316
    %v318 = vpop.f32.mrb[0].mxu0
    %v319 = vpop.f32.mrb[0].mxu0
    %v320 = vadd.f32 %v232, %v319
    %v321 = vpop.f32.mrb[0].mxu0
    %322 = vdwg.mxu0
    %v323 = vmax.f32 %v317, 0.0
    %v324 = vmax.f32 %v320, 0.0
    %v325 = vpack.c.bf16 %v324, %v323
    %v326 = vld [vmem:[#allocation6] sm:$0xf]
    %v327 = vld [vmem:[#allocation6 + $0x4] sm:$0xf]
    %v328 = vld [vmem:[#allocation6 + $0x8] sm:$0xf]
    %v329 = vld [vmem:[#allocation6 + $0xc] sm:$0xf]
    %v330 = vld [vmem:[#allocation6 + $0x10] sm:$0xf]
    %v331 = vld [vmem:[#allocation6 + $0x14] sm:$0xf]
    %v332 = vld [vmem:[#allocation6 + $0x18] sm:$0xf]
    %v333 = vld [vmem:[#allocation6 + $0x1c] sm:$0xf]
    %v334 = vld [vmem:[#allocation6 + $0x20] sm:$0xf]
    %v335 = vld [vmem:[#allocation6 + $0x24] sm:$0xf]
    %v336 = vld [vmem:[#allocation6 + $0x28] sm:$0xf]
    %v337 = vld [vmem:[#allocation6 + $0x2c] sm:$0xf]
    %v338 = vld [vmem:[#allocation6 + $0x30] sm:$0xf]
    %v339 = vld [vmem:[#allocation6 + $0x34] sm:$0xf]
    %v340 = vld [vmem:[#allocation6 + $0x38] sm:$0xf]
    %v341 = vld [vmem:[#allocation6 + $0x3c] sm:$0xf]
    %v342 = vld [vmem:[%s6] sm:$0x1]
    %v344 = vlaneseq
    %v345 = vshrl.u32 %v344, 7
    %v346 = vsub.s32 0, %v345
    %v347 = vrot.slane %v342, %v346
    %v365 = vunpack.c.l.b16 %v326
    %v366 = vunpack.c.l.b16 %v327
    %v367 = vunpack.c.l.b16 %v328
    %v368 = vunpack.c.l.b16 %v329
    %v369 = vunpack.c.l.b16 %v330
    %v370 = vunpack.c.l.b16 %v331
    %v371 = vunpack.c.l.b16 %v332
    %v372 = vunpack.c.l.b16 %v333
    %v373 = vunpack.c.l.b16 %v334
    %v374 = vunpack.c.l.b16 %v335
    %v375 = vunpack.c.l.b16 %v336
    %v376 = vunpack.c.l.b16 %v337
    %v377 = vunpack.c.l.b16 %v338
    %v378 = vunpack.c.l.b16 %v339
    %v379 = vunpack.c.l.b16 %v340
    %v380 = vunpack.c.l.b16 %v341
    %v381 = vpack.c.b16 %v366, %v365
    %v382 = vpack.c.b16 %v368, %v367
    %v383 = vpack.c.b16 %v370, %v369
    %v384 = vpack.c.b16 %v372, %v371
    %v385 = vpack.c.b16 %v374, %v373
    %v386 = vpack.c.b16 %v376, %v375
    %v387 = vpack.c.b16 %v378, %v377
    %v388 = vpack.c.b16 %v380, %v379
    %397 = vmatprep.subr.bf16.mxu0 0
    %398 = vmatpush1.bf16.msra.mxu0 %v381
    %399 = vmatprep.subr.bf16.mxu0 0
    %400 = vmatpush1.bf16.msra.mxu0 %v382
    %401 = vmatprep.subr.bf16.mxu0 0
    %402 = vmatpush1.bf16.msra.mxu0 %v383
    %403 = vmatprep.subr.bf16.mxu0 0
    %404 = vmatpush1.bf16.msra.mxu0 %v384
    %405 = vmatprep.subr.bf16.mxu0 0
    %406 = vmatpush1.bf16.msra.mxu0 %v385
    %407 = vmatprep.subr.bf16.mxu0 0
    %408 = vmatpush1.bf16.msra.mxu0 %v386
    %409 = vmatprep.subr.bf16.mxu0 0
    %410 = vmatpush1.bf16.msra.mxu0 %v387
    %411 = vmatprep.subr.bf16.mxu0 0
    %412 = vmatpush1.bf16.msra.mxu0 %v388
    %413 = vmatprep.subr.bf16.mxu0 0
    %414 = vmatpush1.bf16.msra.mxu0 0
    %415 = vmatprep.subr.bf16.mxu0 0
    %416 = vmatpush1.bf16.msra.mxu0 0
    %417 = vmatprep.subr.bf16.mxu0 0
    %418 = vmatpush1.bf16.msra.mxu0 0
    %419 = vmatprep.subr.bf16.mxu0 0
    %420 = vmatpush1.bf16.msra.mxu0 0
    %421 = vmatprep.subr.bf16.mxu0 0
    %422 = vmatpush1.bf16.msra.mxu0 0
    %423 = vmatprep.subr.bf16.mxu0 0
    %424 = vmatpush1.bf16.msra.mxu0 0
    %425 = vmatprep.subr.bf16.mxu0 0
    %426 = vmatpush1.bf16.msra.mxu0 0
    %427 = vmatprep.subr.bf16.mxu0 0
    %428 = vmatpush1.bf16.msra.mxu0 0
    %429 = vmatprep.mubr.bf16.mxu0 0
    %430 = vmatmul.mubr.bf16.gmra.mrb[0].mxu0 %v325
    %v431 = vpop.f32.mrb[0].mxu0
    %v432 = vadd.f32 %v347, %v431
    %v433 = vpop.f32.mrb[0].mxu0
    %v434 = vpop.f32.mrb[0].mxu0
    %v435 = vadd.f32 %v347, %v434
    %v436 = vpop.f32.mrb[0].mxu0
    %437 = vdwg.mxu0
    %v438 = vadd.f32 %v208, %v432
    %v439 = vadd.f32 %v209, %v435
    %v440 = vmax.f32 %v438, 0.0
    %v441 = vmax.f32 %v439, 0.0
    %v442 = vpack.c.bf16 %v441, %v440
    %s443 = scalar_lea.vmem [#allocation4], 64
    %v444 = vld [vmem:[%s443] sm:$0xf]
    %v445 = vld [vmem:[%s443 + $0x4] sm:$0xf]
    %v446 = vld [vmem:[%s443 + $0x8] sm:$0xf]
    %v447 = vld [vmem:[%s443 + $0xc] sm:$0xf]
    %v448 = vld [vmem:[%s443 + $0x10] sm:$0xf]
    %v449 = vld [vmem:[%s443 + $0x14] sm:$0xf]
    %v450 = vld [vmem:[%s443 + $0x18] sm:$0xf]
    %v451 = vld [vmem:[%s443 + $0x1c] sm:$0xf]
    %v452 = vld [vmem:[%s443 + $0x20] sm:$0xf]
    %v453 = vld [vmem:[%s443 + $0x24] sm:$0xf]
    %v454 = vld [vmem:[%s443 + $0x28] sm:$0xf]
    %v455 = vld [vmem:[%s443 + $0x2c] sm:$0xf]
    %v456 = vld [vmem:[%s443 + $0x30] sm:$0xf]
    %v457 = vld [vmem:[%s443 + $0x34] sm:$0xf]
    %v458 = vld [vmem:[%s443 + $0x38] sm:$0xf]
    %v459 = vld [vmem:[%s443 + $0x3c] sm:$0xf]
    %s460 = scalar_lea.vmem %s4, 1
    %v461 = vld [vmem:[%s460] sm:$0x1]
    %v463 = vlaneseq
    %v464 = vshrl.u32 %v463, 7
    %v465 = vsub.s32 0, %v464
    %v466 = vrot.slane %v461, %v465
    %v484 = vunpack.c.l.b16 %v444
    %v485 = vunpack.c.l.b16 %v445
    %v486 = vunpack.c.l.b16 %v446
    %v487 = vunpack.c.l.b16 %v447
    %v488 = vunpack.c.l.b16 %v448
    %v489 = vunpack.c.l.b16 %v449
    %v490 = vunpack.c.l.b16 %v450
    %v491 = vunpack.c.l.b16 %v451
    %v492 = vunpack.c.l.b16 %v452
    %v493 = vunpack.c.l.b16 %v453
    %v494 = vunpack.c.l.b16 %v454
    %v495 = vunpack.c.l.b16 %v455
    %v496 = vunpack.c.l.b16 %v456
    %v497 = vunpack.c.l.b16 %v457
    %v498 = vunpack.c.l.b16 %v458
    %v499 = vunpack.c.l.b16 %v459
    %v500 = vpack.c.b16 %v485, %v484
    %v501 = vpack.c.b16 %v487, %v486
    %v502 = vpack.c.b16 %v489, %v488
    %v503 = vpack.c.b16 %v491, %v490
    %v504 = vpack.c.b16 %v493, %v492
    %v505 = vpack.c.b16 %v495, %v494
    %v506 = vpack.c.b16 %v497, %v496
    %v507 = vpack.c.b16 %v499, %v498
    %516 = vmatprep.subr.bf16.mxu0 0
    %517 = vmatpush1.bf16.msra.mxu0 %v500
    %518 = vmatprep.subr.bf16.mxu0 0
    %519 = vmatpush1.bf16.msra.mxu0 %v501
    %520 = vmatprep.subr.bf16.mxu0 0
    %521 = vmatpush1.bf16.msra.mxu0 %v502
    %522 = vmatprep.subr.bf16.mxu0 0
    %523 = vmatpush1.bf16.msra.mxu0 %v503
    %524 = vmatprep.subr.bf16.mxu0 0
    %525 = vmatpush1.bf16.msra.mxu0 %v504
    %526 = vmatprep.subr.bf16.mxu0 0
    %527 = vmatpush1.bf16.msra.mxu0 %v505
    %528 = vmatprep.subr.bf16.mxu0 0
    %529 = vmatpush1.bf16.msra.mxu0 %v506
    %530 = vmatprep.subr.bf16.mxu0 0
    %531 = vmatpush1.bf16.msra.mxu0 %v507
    %532 = vmatprep.subr.bf16.mxu0 0
    %533 = vmatpush1.bf16.msra.mxu0 0
    %534 = vmatprep.subr.bf16.mxu0 0
    %535 = vmatpush1.bf16.msra.mxu0 0
    %536 = vmatprep.subr.bf16.mxu0 0
    %537 = vmatpush1.bf16.msra.mxu0 0
    %538 = vmatprep.subr.bf16.mxu0 0
    %539 = vmatpush1.bf16.msra.mxu0 0
    %540 = vmatprep.subr.bf16.mxu0 0
    %541 = vmatpush1.bf16.msra.mxu0 0
    %542 = vmatprep.subr.bf16.mxu0 0
    %543 = vmatpush1.bf16.msra.mxu0 0
    %544 = vmatprep.subr.bf16.mxu0 0
    %545 = vmatpush1.bf16.msra.mxu0 0
    %546 = vmatprep.subr.bf16.mxu0 0
    %547 = vmatpush1.bf16.msra.mxu0 0
    %548 = vmatprep.mubr.bf16.mxu0 0
    %549 = vmatmul.mubr.bf16.gmra.mrb[0].mxu0 %v442
    %v550 = vpop.f32.mrb[0].mxu0
    %v551 = vadd.f32 %v466, %v550
    %v552 = vpop.f32.mrb[0].mxu0
    %v553 = vpop.f32.mrb[0].mxu0
    %v554 = vadd.f32 %v466, %v553
    %v555 = vpop.f32.mrb[0].mxu0
    %556 = vdwg.mxu0
    %v557 = vmax.f32 %v551, 0.0
    %v558 = vmax.f32 %v554, 0.0
    %v559 = vpack.c.bf16 %v558, %v557
    %s560 = scalar_lea.vmem [#allocation6], 64
    %v561 = vld [vmem:[%s560] sm:$0xf]
    %v562 = vld [vmem:[%s560 + $0x4] sm:$0xf]
    %v563 = vld [vmem:[%s560 + $0x8] sm:$0xf]
    %v564 = vld [vmem:[%s560 + $0xc] sm:$0xf]
    %v565 = vld [vmem:[%s560 + $0x10] sm:$0xf]
    %v566 = vld [vmem:[%s560 + $0x14] sm:$0xf]
    %v567 = vld [vmem:[%s560 + $0x18] sm:$0xf]
    %v568 = vld [vmem:[%s560 + $0x1c] sm:$0xf]
    %v569 = vld [vmem:[%s560 + $0x20] sm:$0xf]
    %v570 = vld [vmem:[%s560 + $0x24] sm:$0xf]
    %v571 = vld [vmem:[%s560 + $0x28] sm:$0xf]
    %v572 = vld [vmem:[%s560 + $0x2c] sm:$0xf]
    %v573 = vld [vmem:[%s560 + $0x30] sm:$0xf]
    %v574 = vld [vmem:[%s560 + $0x34] sm:$0xf]
    %v575 = vld [vmem:[%s560 + $0x38] sm:$0xf]
    %v576 = vld [vmem:[%s560 + $0x3c] sm:$0xf]
    %s577 = scalar_lea.vmem %s6, 1
    %v578 = vld [vmem:[%s577] sm:$0x1]
    %v580 = vlaneseq
    %v581 = vshrl.u32 %v580, 7
    %v582 = vsub.s32 0, %v581
    %v583 = vrot.slane %v578, %v582
    %v601 = vunpack.c.l.b16 %v561
    %v602 = vunpack.c.l.b16 %v562
    %v603 = vunpack.c.l.b16 %v563
    %v604 = vunpack.c.l.b16 %v564
    %v605 = vunpack.c.l.b16 %v565
    %v606 = vunpack.c.l.b16 %v566
    %v607 = vunpack.c.l.b16 %v567
    %v608 = vunpack.c.l.b16 %v568
    %v609 = vunpack.c.l.b16 %v569
    %v610 = vunpack.c.l.b16 %v570
    %v611 = vunpack.c.l.b16 %v571
    %v612 = vunpack.c.l.b16 %v572
    %v613 = vunpack.c.l.b16 %v573
    %v614 = vunpack.c.l.b16 %v574
    %v615 = vunpack.c.l.b16 %v575
    %v616 = vunpack.c.l.b16 %v576
    %v617 = vpack.c.b16 %v602, %v601
    %v618 = vpack.c.b16 %v604, %v603
    %v619 = vpack.c.b16 %v606, %v605
    %v620 = vpack.c.b16 %v608, %v607
    %v621 = vpack.c.b16 %v610, %v609
    %v622 = vpack.c.b16 %v612, %v611
    %v623 = vpack.c.b16 %v614, %v613
    %v624 = vpack.c.b16 %v616, %v615
    %633 = vmatprep.subr.bf16.mxu0 0
    %634 = vmatpush1.bf16.msra.mxu0 %v617
    %635 = vmatprep.subr.bf16.mxu0 0
    %636 = vmatpush1.bf16.msra.mxu0 %v618
    %637 = vmatprep.subr.bf16.mxu0 0
    %638 = vmatpush1.bf16.msra.mxu0 %v619
    %639 = vmatprep.subr.bf16.mxu0 0
    %640 = vmatpush1.bf16.msra.mxu0 %v620
    %641 = vmatprep.subr.bf16.mxu0 0
    %642 = vmatpush1.bf16.msra.mxu0 %v621
    %643 = vmatprep.subr.bf16.mxu0 0
    %644 = vmatpush1.bf16.msra.mxu0 %v622
    %645 = vmatprep.subr.bf16.mxu0 0
    %646 = vmatpush1.bf16.msra.mxu0 %v623
    %647 = vmatprep.subr.bf16.mxu0 0
    %648 = vmatpush1.bf16.msra.mxu0 %v624
    %649 = vmatprep.subr.bf16.mxu0 0
    %650 = vmatpush1.bf16.msra.mxu0 0
    %651 = vmatprep.subr.bf16.mxu0 0
    %652 = vmatpush1.bf16.msra.mxu0 0
    %653 = vmatprep.subr.bf16.mxu0 0
    %654 = vmatpush1.bf16.msra.mxu0 0
    %655 = vmatprep.subr.bf16.mxu0 0
    %656 = vmatpush1.bf16.msra.mxu0 0
    %657 = vmatprep.subr.bf16.mxu0 0
    %658 = vmatpush1.bf16.msra.mxu0 0
    %659 = vmatprep.subr.bf16.mxu0 0
    %660 = vmatpush1.bf16.msra.mxu0 0
    %661 = vmatprep.subr.bf16.mxu0 0
    %662 = vmatpush1.bf16.msra.mxu0 0
    %663 = vmatprep.subr.bf16.mxu0 0
    %664 = vmatpush1.bf16.msra.mxu0 0
    %665 = vmatprep.mubr.bf16.mxu0 0
    %666 = vmatmul.mubr.bf16.gmra.mrb[0].mxu0 %v559
    %v667 = vpop.f32.mrb[0].mxu0
    %v668 = vadd.f32 %v583, %v667
    %v669 = vpop.f32.mrb[0].mxu0
    %v670 = vpop.f32.mrb[0].mxu0
    %v671 = vadd.f32 %v583, %v670
    %v672 = vpop.f32.mrb[0].mxu0
    %673 = vdwg.mxu0
    %v674 = vadd.f32 %v440, %v668
    %v675 = vadd.f32 %v441, %v671
    %v676 = vmax.f32 %v674, 0.0
    %v677 = vmax.f32 %v675, 0.0
    %v678 = vpack.c.bf16 %v677, %v676
    %v679 = vld [vmem:[#allocation7] sm:$0xf]
    %v680 = vld [vmem:[#allocation7 + $0x4] sm:$0xf]
    %v681 = vld [vmem:[#allocation7 + $0x8] sm:$0xf]
    %v682 = vld [vmem:[#allocation7 + $0xc] sm:$0xf]
    %v683 = vld [vmem:[#allocation7 + $0x10] sm:$0xf]
    %v684 = vld [vmem:[#allocation7 + $0x14] sm:$0xf]
    %v685 = vld [vmem:[#allocation7 + $0x18] sm:$0xf]
    %v686 = vld [vmem:[#allocation7 + $0x1c] sm:$0xf]
    %v687 = vld [vmem:[#allocation7 + $0x20] sm:$0xf]
    %v688 = vld [vmem:[#allocation7 + $0x24] sm:$0xf]
    %v689 = vld [vmem:[#allocation7 + $0x28] sm:$0xf]
    %v690 = vld [vmem:[#allocation7 + $0x2c] sm:$0xf]
    %v691 = vld [vmem:[#allocation7 + $0x30] sm:$0xf]
    %v692 = vld [vmem:[#allocation7 + $0x34] sm:$0xf]
    %v693 = vld [vmem:[#allocation7 + $0x38] sm:$0xf]
    %v694 = vld [vmem:[#allocation7 + $0x3c] sm:$0xf]
    %v695 = vld [vmem:[%s8] sm:$0x1]
    %v697 = vlaneseq
    %v698 = vshrl.u32 %v697, 7
    %v699 = vsub.s32 0, %v698
    %v700 = vrot.slane %v695, %v699
    %v718 = vunpack.c.l.b16 %v679
    %v719 = vunpack.c.l.b16 %v680
    %v720 = vunpack.c.l.b16 %v681
    %v721 = vunpack.c.l.b16 %v682
    %v722 = vunpack.c.l.b16 %v683
    %v723 = vunpack.c.l.b16 %v684
    %v724 = vunpack.c.l.b16 %v685
    %v725 = vunpack.c.l.b16 %v686
    %v726 = vunpack.c.l.b16 %v687
    %v727 = vunpack.c.l.b16 %v688
    %v728 = vunpack.c.l.b16 %v689
    %v729 = vunpack.c.l.b16 %v690
    %v730 = vunpack.c.l.b16 %v691
    %v731 = vunpack.c.l.b16 %v692
    %v732 = vunpack.c.l.b16 %v693
    %v733 = vunpack.c.l.b16 %v694
    %v734 = vpack.c.b16 %v719, %v718
    %v735 = vpack.c.b16 %v721, %v720
    %v736 = vpack.c.b16 %v723, %v722
    %v737 = vpack.c.b16 %v725, %v724
    %v738 = vpack.c.b16 %v727, %v726
    %v739 = vpack.c.b16 %v729, %v728
    %v740 = vpack.c.b16 %v731, %v730
    %v741 = vpack.c.b16 %v733, %v732
    %750 = vmatprep.subr.bf16.mxu0 0
    %751 = vmatpush1.bf16.msra.mxu0 %v734
    %752 = vmatprep.subr.bf16.mxu0 0
    %753 = vmatpush1.bf16.msra.mxu0 %v735
    %754 = vmatprep.subr.bf16.mxu0 0
    %755 = vmatpush1.bf16.msra.mxu0 %v736
    %756 = vmatprep.subr.bf16.mxu0 0
    %757 = vmatpush1.bf16.msra.mxu0 %v737
    %758 = vmatprep.subr.bf16.mxu0 0
    %759 = vmatpush1.bf16.msra.mxu0 %v738
    %760 = vmatprep.subr.bf16.mxu0 0
    %761 = vmatpush1.bf16.msra.mxu0 %v739
    %762 = vmatprep.subr.bf16.mxu0 0
    %763 = vmatpush1.bf16.msra.mxu0 %v740
    %764 = vmatprep.subr.bf16.mxu0 0
    %765 = vmatpush1.bf16.msra.mxu0 %v741
    %766 = vmatprep.subr.bf16.mxu0 0
    %767 = vmatpush1.bf16.msra.mxu0 0
    %768 = vmatprep.subr.bf16.mxu0 0
    %769 = vmatpush1.bf16.msra.mxu0 0
    %770 = vmatprep.subr.bf16.mxu0 0
    %771 = vmatpush1.bf16.msra.mxu0 0
    %772 = vmatprep.subr.bf16.mxu0 0
    %773 = vmatpush1.bf16.msra.mxu0 0
    %774 = vmatprep.subr.bf16.mxu0 0
    %775 = vmatpush1.bf16.msra.mxu0 0
    %776 = vmatprep.subr.bf16.mxu0 0
    %777 = vmatpush1.bf16.msra.mxu0 0
    %778 = vmatprep.subr.bf16.mxu0 0
    %779 = vmatpush1.bf16.msra.mxu0 0
    %780 = vmatprep.subr.bf16.mxu0 0
    %781 = vmatpush1.bf16.msra.mxu0 0
    %782 = vmatprep.mubr.bf16.mxu0 0
    %783 = vmatmul.mubr.bf16.gmra.mrb[0].mxu0 %v678
    %v784 = vpop.f32.mrb[0].mxu0
    %v785 = vadd.f32 %v700, %v784
    %v786 = vpop.f32.mrb[0].mxu0
    %v787 = vpop.f32.mrb[0].mxu0
    %v788 = vadd.f32 %v700, %v787
    %v789 = vpop.f32.mrb[0].mxu0
    %790 = vdwg.mxu0
    %791 = vst [vmem:[%s9] sm:$0xff] %v785
    %792 = vst [vmem:[%s9 + $0x8] sm:$0xff] %v788
    // Predicated region
    $region54: #{residual_fc_forward.1} parent=1 // pred_check
      _
    $region55: #{residual_fc_forward.1} parent=1 // pred_check_branch
      %794 = sbr.rel (0) target = $region57
    $region56: #{residual_fc_forward.1} parent=1 // pred_region
      _
    $region57: #{residual_fc_forward.1} parent=1 // pred_fallthru
      _
    // Predicated region
    $region58: #{residual_fc_forward.1} parent=1 // pred_check
      _
    $region59: #{residual_fc_forward.1} parent=1 // pred_check_branch
      %796 = sbr.rel (0) target = $region61
    $region60: #{residual_fc_forward.1} parent=1 // pred_region
      _
    $region61: #{residual_fc_forward.1} parent=1 // pred_fallthru
      _
    %797 = vsyncpa [#allocation3], 1
    %798 = vsyncpa [#allocation5], 1
    %799 = vsyncpa [#allocation8], 1

// kernel: residual_fc_forward.1
$region0: #{residual_fc_forward.1}
  #allocation0 [shape = 'u32[]', space=smem, size = 0x4, offset = 0x4, fixed_abs, tag = 'smem constant byte address 0x4 - core index']
  #allocation1 [shape = 'u32[144,128]{1,0:T(1,128)}', space=vmem, size = 0x12000, scoped, tag = 'internal scratch']
  %s0 = inlined_call_operand.vmem [shape: bf16[16,128], index: 0, kind: input, shape index: {}]
  %s1 = inlined_call_operand.hbm [shape: bf16[128,128], index: 1, kind: input, shape index: {}]
  %s2 = inlined_call_operand.vmem [shape: f32[1,128], index: 2, kind: input, shape index: {}]
  %s3 = inlined_call_operand.hbm [shape: bf16[2,128,128], index: 3, kind: input, shape index: {}]
  %s4 = inlined_call_operand.vmem [shape: f32[2,1,128], index: 4, kind: input, shape index: {}]
  %s5 = inlined_call_operand.hbm [shape: bf16[2,128,128], index: 5, kind: input, shape index: {}]
  %s6 = inlined_call_operand.vmem [shape: f32[2,1,128], index: 6, kind: input, shape index: {}]
  %s7 = inlined_call_operand.hbm [shape: bf16[128,128], index: 7, kind: input, shape index: {}]
  %s8 = inlined_call_operand.vmem [shape: f32[1,128], index: 8, kind: input, shape index: {}]
  %s9 = inlined_call_operand.vmem [shape: f32[16,128], index: 9, kind: output, shape index: {}]
  %s10 = sld [smem:[#allocation0]]
  $region62: #{residual_fc_forward.1} parent=0
    _
  %s12 = ssub.s32 1, %s10
  %s13 = scalar_select 0, %s12, %s10
  $region1: #{residual_fc_forward.1} parent=0
    #allocation2 [shape = 'u8[32768]{0}', space=vmem, size = 0x8000, scoped, tag = 'input window, operand 1, single buffered']
    #allocation3 [shape = 's32[1]{0}', space=sflag, size = 0x4, scoped, tag = 'scoped memory for residual_fc_forward.1']
    #allocation4 [shape = 'u8[65536]{0}', space=vmem, size = 0x10000, scoped, tag = 'input window, operand 3, single buffered']
    #allocation5 [shape = 's32[1]{0}', space=sflag, size = 0x4, scoped, tag = 'scoped memory for residual_fc_forward.1']
    #allocation6 [shape = 'u8[65536]{0}', space=vmem, size = 0x10000, scoped, tag = 'input window, operand 5, single buffered']
    #allocation7 [shape = 'u8[32768]{0}', space=vmem, size = 0x8000, scoped, tag = 'input window, operand 7, single buffered']
    #allocation8 [shape = 's32[1]{0}', space=sflag, size = 0x4, scoped, tag = 'scoped memory for residual_fc_forward.1']
    %14 = vsyncpa [#allocation3], 0
    %15 = vsyncpa [#allocation5], 0
    %16 = vsyncpa [#allocation8], 0
    // Predicated region
    $region2: #{residual_fc_forward.1} parent=1 // pred_check
      _
    $region3: #{residual_fc_forward.1} parent=1 // pred_check_branch
      %18 = sbr.rel (0) target = $region5
    $region4: #{residual_fc_forward.1} parent=1 // pred_region
      _
    $region5: #{residual_fc_forward.1} parent=1 // pred_fallthru
      _
    // Predicated region
    $region6: #{residual_fc_forward.1} parent=1 // pred_check
      _
    $region7: #{residual_fc_forward.1} parent=1 // pred_check_branch
      %20 = sbr.rel (0) target = $region9
    $region8: #{residual_fc_forward.1} parent=1 // pred_region
      %s22 = ssub.s32 1024, 1024
      %23 = vsyncadd [#allocation3], %s22
      %s24 = sshll.u32 [#allocation2], 4
      %s25 = int_to_ptr.vmem [resolvable:$true] %s24
      %30 = dma.hbm_to_vmem [thread:$0]  %s1, 1024, %s25, [#allocation3], 64, 64, 4
    $region9: #{residual_fc_forward.1} parent=1 // pred_fallthru
      _
    // Predicated region
    $region10: #{residual_fc_forward.1} parent=1 // pred_check
      _
    $region11: #{residual_fc_forward.1} parent=1 // pred_check_branch
      %32 = sbr.rel (0) target = $region13
    $region12: #{residual_fc_forward.1} parent=1 // pred_region
      _
    $region13: #{residual_fc_forward.1} parent=1 // pred_fallthru
      _
    // Predicated region
    $region14: #{residual_fc_forward.1} parent=1 // pred_check
      _
    $region15: #{residual_fc_forward.1} parent=1 // pred_check_branch
      %34 = sbr.rel (0) target = $region17
    $region16: #{residual_fc_forward.1} parent=1 // pred_region
      %s36 = ssub.s32 2048, 2048
      %37 = vsyncadd [#allocation5], %s36
      %s38 = sshll.u32 [#allocation4], 4
      %s39 = int_to_ptr.vmem [resolvable:$true] %s38
      %44 = dma.hbm_to_vmem [thread:$0]  %s3, 2048, %s39, [#allocation5], 64, 64, 4
    $region17: #{residual_fc_forward.1} parent=1 // pred_fallthru
      _
    // Predicated region
    $region18: #{residual_fc_forward.1} parent=1 // pred_check
      _
    $region19: #{residual_fc_forward.1} parent=1 // pred_check_branch
      %46 = sbr.rel (0) target = $region21
    $region20: #{residual_fc_forward.1} parent=1 // pred_region
      _
    $region21: #{residual_fc_forward.1} parent=1 // pred_fallthru
      _
    // Predicated region
    $region22: #{residual_fc_forward.1} parent=1 // pred_check
      _
    $region23: #{residual_fc_forward.1} parent=1 // pred_check_branch
      %48 = sbr.rel (0) target = $region25
    $region24: #{residual_fc_forward.1} parent=1 // pred_region
      %s50 = ssub.s32 2048, 2048
      %51 = vsyncadd [#allocation5], %s50
      %s52 = sshll.u32 [#allocation6], 4
      %s53 = int_to_ptr.vmem [resolvable:$true] %s52
      %58 = dma.hbm_to_vmem [thread:$0]  %s5, 2048, %s53, [#allocation5], 64, 64, 4
    $region25: #{residual_fc_forward.1} parent=1 // pred_fallthru
      _
    // Predicated region
    $region26: #{residual_fc_forward.1} parent=1 // pred_check
      _
    $region27: #{residual_fc_forward.1} parent=1 // pred_check_branch
      %60 = sbr.rel (0) target = $region29
    $region28: #{residual_fc_forward.1} parent=1 // pred_region
      _
    $region29: #{residual_fc_forward.1} parent=1 // pred_fallthru
      _
    // Predicated region
    $region30: #{residual_fc_forward.1} parent=1 // pred_check
      _
    $region31: #{residual_fc_forward.1} parent=1 // pred_check_branch
      %62 = sbr.rel (0) target = $region33
    $region32: #{residual_fc_forward.1} parent=1 // pred_region
      %s64 = ssub.s32 1024, 1024
      %65 = vsyncadd [#allocation8], %s64
      %s66 = sshll.u32 [#allocation7], 4
      %s67 = int_to_ptr.vmem [resolvable:$true] %s66
      %72 = dma.hbm_to_vmem [thread:$0]  %s7, 1024, %s67, [#allocation8], 64, 64, 4
    $region33: #{residual_fc_forward.1} parent=1 // pred_fallthru
      _
    // Predicated region
    $region34: #{residual_fc_forward.1} parent=1 // pred_check
      _
    $region35: #{residual_fc_forward.1} parent=1 // pred_check_branch
      %74 = sbr.rel (0) target = $region37
    $region36: #{residual_fc_forward.1} parent=1 // pred_region
      _
    $region37: #{residual_fc_forward.1} parent=1 // pred_fallthru
      _
    // Predicated region
    $region38: #{residual_fc_forward.1} parent=1 // pred_check
      _
    $region39: #{residual_fc_forward.1} parent=1 // pred_check_branch
      %76 = sbr.rel (0) target = $region41
    $region40: #{residual_fc_forward.1} parent=1 // pred_region
      %77 = dma.done [#allocation3], 1024
    $region41: #{residual_fc_forward.1} parent=1 // pred_fallthru
      _
    // Predicated region
    $region42: #{residual_fc_forward.1} parent=1 // pred_check
      _
    $region43: #{residual_fc_forward.1} parent=1 // pred_check_branch
      %79 = sbr.rel (0) target = $region45
    $region44: #{residual_fc_forward.1} parent=1 // pred_region
      %80 = dma.done [#allocation5], 2048
    $region45: #{residual_fc_forward.1} parent=1 // pred_fallthru
      _
    // Predicated region
    $region46: #{residual_fc_forward.1} parent=1 // pred_check
      _
    $region47: #{residual_fc_forward.1} parent=1 // pred_check_branch
      %82 = sbr.rel (0) target = $region49
    $region48: #{residual_fc_forward.1} parent=1 // pred_region
      %83 = dma.done [#allocation5], 2048
    $region49: #{residual_fc_forward.1} parent=1 // pred_fallthru
      _
    // Predicated region
    $region50: #{residual_fc_forward.1} parent=1 // pred_check
      _
    $region51: #{residual_fc_forward.1} parent=1 // pred_check_branch
      %85 = sbr.rel (0) target = $region53
    $region52: #{residual_fc_forward.1} parent=1 // pred_region
      %86 = dma.done [#allocation8], 1024
    $region53: #{residual_fc_forward.1} parent=1 // pred_fallthru
      _
    %v88 = vld [vmem:[%s0] sm:$0xf]
    %v89 = vld [vmem:[%s0 + $0x4] sm:$0xf]
    %v90 = vld [vmem:[#allocation2] sm:$0xf]
    %v91 = vld [vmem:[#allocation2 + $0x4] sm:$0xf]
    %v92 = vld [vmem:[#allocation2 + $0x8] sm:$0xf]
    %v93 = vld [vmem:[#allocation2 + $0xc] sm:$0xf]
    %v94 = vld [vmem:[#allocation2 + $0x10] sm:$0xf]
    %v95 = vld [vmem:[#allocation2 + $0x14] sm:$0xf]
    %v96 = vld [vmem:[#allocation2 + $0x18] sm:$0xf]
    %v97 = vld [vmem:[#allocation2 + $0x1c] sm:$0xf]
    %v98 = vld [vmem:[#allocation2 + $0x20] sm:$0xf]
    %v99 = vld [vmem:[#allocation2 + $0x24] sm:$0xf]
    %v100 = vld [vmem:[#allocation2 + $0x28] sm:$0xf]
    %v101 = vld [vmem:[#allocation2 + $0x2c] sm:$0xf]
    %v102 = vld [vmem:[#allocation2 + $0x30] sm:$0xf]
    %v103 = vld [vmem:[#allocation2 + $0x34] sm:$0xf]
    %v104 = vld [vmem:[#allocation2 + $0x38] sm:$0xf]
    %v105 = vld [vmem:[#allocation2 + $0x3c] sm:$0xf]
    %v106 = vld [vmem:[%s2] sm:$0x1]
    %v108 = vlaneseq
    %v109 = vshrl.u32 %v108, 7
    %v110 = vsub.s32 0, %v109
    %v111 = vrot.slane %v106, %v110
    %v115 = vunpack.c.l.b16 %v88
    %v116 = vunpack.c.l.b16 %v89
    %v117 = vpack.c.b16 %v116, %v115
    %v135 = vunpack.c.l.b16 %v90
    %v136 = vunpack.c.l.b16 %v91
    %v137 = vunpack.c.l.b16 %v92
    %v138 = vunpack.c.l.b16 %v93
    %v139 = vunpack.c.l.b16 %v94
    %v140 = vunpack.c.l.b16 %v95
    %v141 = vunpack.c.l.b16 %v96
    %v142 = vunpack.c.l.b16 %v97
    %v143 = vunpack.c.l.b16 %v98
    %v144 = vunpack.c.l.b16 %v99
    %v145 = vunpack.c.l.b16 %v100
    %v146 = vunpack.c.l.b16 %v101
    %v147 = vunpack.c.l.b16 %v102
    %v148 = vunpack.c.l.b16 %v103
    %v149 = vunpack.c.l.b16 %v104
    %v150 = vunpack.c.l.b16 %v105
    %v151 = vpack.c.b16 %v136, %v135
    %v152 = vpack.c.b16 %v138, %v137
    %v153 = vpack.c.b16 %v140, %v139
    %v154 = vpack.c.b16 %v142, %v141
    %v155 = vpack.c.b16 %v144, %v143
    %v156 = vpack.c.b16 %v146, %v145
    %v157 = vpack.c.b16 %v148, %v147
    %v158 = vpack.c.b16 %v150, %v149
    %167 = vmatprep.subr.bf16.mxu0 0
    %168 = vmatpush1.bf16.msra.mxu0 %v151
    %169 = vmatprep.subr.bf16.mxu0 0
    %170 = vmatpush1.bf16.msra.mxu0 %v152
    %171 = vmatprep.subr.bf16.mxu0 0
    %172 = vmatpush1.bf16.msra.mxu0 %v153
    %173 = vmatprep.subr.bf16.mxu0 0
    %174 = vmatpush1.bf16.msra.mxu0 %v154
    %175 = vmatprep.subr.bf16.mxu0 0
    %176 = vmatpush1.bf16.msra.mxu0 %v155
    %177 = vmatprep.subr.bf16.mxu0 0
    %178 = vmatpush1.bf16.msra.mxu0 %v156
    %179 = vmatprep.subr.bf16.mxu0 0
    %180 = vmatpush1.bf16.msra.mxu0 %v157
    %181 = vmatprep.subr.bf16.mxu0 0
    %182 = vmatpush1.bf16.msra.mxu0 %v158
    %183 = vmatprep.subr.bf16.mxu0 0
    %184 = vmatpush1.bf16.msra.mxu0 0
    %185 = vmatprep.subr.bf16.mxu0 0
    %186 = vmatpush1.bf16.msra.mxu0 0
    %187 = vmatprep.subr.bf16.mxu0 0
    %188 = vmatpush1.bf16.msra.mxu0 0
    %189 = vmatprep.subr.bf16.mxu0 0
    %190 = vmatpush1.bf16.msra.mxu0 0
    %191 = vmatprep.subr.bf16.mxu0 0
    %192 = vmatpush1.bf16.msra.mxu0 0
    %193 = vmatprep.subr.bf16.mxu0 0
    %194 = vmatpush1.bf16.msra.mxu0 0
    %195 = vmatprep.subr.bf16.mxu0 0
    %196 = vmatpush1.bf16.msra.mxu0 0
    %197 = vmatprep.subr.bf16.mxu0 0
    %198 = vmatpush1.bf16.msra.mxu0 0
    %199 = vmatprep.mubr.bf16.mxu0 0
    %200 = vmatmul.mubr.bf16.gmra.mrb[0].mxu0 %v117
    %v201 = vpop.f32.mrb[0].mxu0
    %v202 = vadd.f32 %v111, %v201
    %v203 = vpop.f32.mrb[0].mxu0
    %v204 = vpop.f32.mrb[0].mxu0
    %v205 = vadd.f32 %v111, %v204
    %v206 = vpop.f32.mrb[0].mxu0
    %207 = vdwg.mxu0
    %v208 = vmax.f32 %v202, 0.0
    %v209 = vmax.f32 %v205, 0.0
    %v210 = vpack.c.bf16 %v209, %v208
    %v211 = vld [vmem:[#allocation4] sm:$0xf]
    %v212 = vld [vmem:[#allocation4 + $0x4] sm:$0xf]
    %v213 = vld [vmem:[#allocation4 + $0x8] sm:$0xf]
    %v214 = vld [vmem:[#allocation4 + $0xc] sm:$0xf]
    %v215 = vld [vmem:[#allocation4 + $0x10] sm:$0xf]
    %v216 = vld [vmem:[#allocation4 + $0x14] sm:$0xf]
    %v217 = vld [vmem:[#allocation4 + $0x18] sm:$0xf]
    %v218 = vld [vmem:[#allocation4 + $0x1c] sm:$0xf]
    %v219 = vld [vmem:[#allocation4 + $0x20] sm:$0xf]
    %v220 = vld [vmem:[#allocation4 + $0x24] sm:$0xf]
    %v221 = vld [vmem:[#allocation4 + $0x28] sm:$0xf]
    %v222 = vld [vmem:[#allocation4 + $0x2c] sm:$0xf]
    %v223 = vld [vmem:[#allocation4 + $0x30] sm:$0xf]
    %v224 = vld [vmem:[#allocation4 + $0x34] sm:$0xf]
    %v225 = vld [vmem:[#allocation4 + $0x38] sm:$0xf]
    %v226 = vld [vmem:[#allocation4 + $0x3c] sm:$0xf]
    %v227 = vld [vmem:[%s4] sm:$0x1]
    %v229 = vlaneseq
    %v230 = vshrl.u32 %v229, 7
    %v231 = vsub.s32 0, %v230
    %v232 = vrot.slane %v227, %v231
    %v250 = vunpack.c.l.b16 %v211
    %v251 = vunpack.c.l.b16 %v212
    %v252 = vunpack.c.l.b16 %v213
    %v253 = vunpack.c.l.b16 %v214
    %v254 = vunpack.c.l.b16 %v215
    %v255 = vunpack.c.l.b16 %v216
    %v256 = vunpack.c.l.b16 %v217
    %v257 = vunpack.c.l.b16 %v218
    %v258 = vunpack.c.l.b16 %v219
    %v259 = vunpack.c.l.b16 %v220
    %v260 = vunpack.c.l.b16 %v221
    %v261 = vunpack.c.l.b16 %v222
    %v262 = vunpack.c.l.b16 %v223
    %v263 = vunpack.c.l.b16 %v224
    %v264 = vunpack.c.l.b16 %v225
    %v265 = vunpack.c.l.b16 %v226
    %v266 = vpack.c.b16 %v251, %v250
    %v267 = vpack.c.b16 %v253, %v252
    %v268 = vpack.c.b16 %v255, %v254
    %v269 = vpack.c.b16 %v257, %v256
    %v270 = vpack.c.b16 %v259, %v258
    %v271 = vpack.c.b16 %v261, %v260
    %v272 = vpack.c.b16 %v263, %v262
    %v273 = vpack.c.b16 %v265, %v264
    %282 = vmatprep.subr.bf16.mxu0 0
    %283 = vmatpush1.bf16.msra.mxu0 %v266
    %284 = vmatprep.subr.bf16.mxu0 0
    %285 = vmatpush1.bf16.msra.mxu0 %v267
    %286 = vmatprep.subr.bf16.mxu0 0
    %287 = vmatpush1.bf16.msra.mxu0 %v268
    %288 = vmatprep.subr.bf16.mxu0 0
    %289 = vmatpush1.bf16.msra.mxu0 %v269
    %290 = vmatprep.subr.bf16.mxu0 0
    %291 = vmatpush1.bf16.msra.mxu0 %v270
    %292 = vmatprep.subr.bf16.mxu0 0
    %293 = vmatpush1.bf16.msra.mxu0 %v271
    %294 = vmatprep.subr.bf16.mxu0 0
    %295 = vmatpush1.bf16.msra.mxu0 %v272
    %296 = vmatprep.subr.bf16.mxu0 0
    %297 = vmatpush1.bf16.msra.mxu0 %v273
    %298 = vmatprep.subr.bf16.mxu0 0
    %299 = vmatpush1.bf16.msra.mxu0 0
    %300 = vmatprep.subr.bf16.mxu0 0
    %301 = vmatpush1.bf16.msra.mxu0 0
    %302 = vmatprep.subr.bf16.mxu0 0
    %303 = vmatpush1.bf16.msra.mxu0 0
    %304 = vmatprep.subr.bf16.mxu0 0
    %305 = vmatpush1.bf16.msra.mxu0 0
    %306 = vmatprep.subr.bf16.mxu0 0
    %307 = vmatpush1.bf16.msra.mxu0 0
    %308 = vmatprep.subr.bf16.mxu0 0
    %309 = vmatpush1.bf16.msra.mxu0 0
    %310 = vmatprep.subr.bf16.mxu0 0
    %311 = vmatpush1.bf16.msra.mxu0 0
    %312 = vmatprep.subr.bf16.mxu0 0
    %313 = vmatpush1.bf16.msra.mxu0 0
    %314 = vmatprep.mubr.bf16.mxu0 0
    %315 = vmatmul.mubr.bf16.gmra.mrb[0].mxu0 %v210
    %v316 = vpop.f32.mrb[0].mxu0
    %v317 = vadd.f32 %v232, %v316
    %v318 = vpop.f32.mrb[0].mxu0
    %v319 = vpop.f32.mrb[0].mxu0
    %v320 = vadd.f32 %v232, %v319
    %v321 = vpop.f32.mrb[0].mxu0
    %322 = vdwg.mxu0
    %v323 = vmax.f32 %v317, 0.0
    %v324 = vmax.f32 %v320, 0.0
    %v325 = vpack.c.bf16 %v324, %v323
    %v326 = vld [vmem:[#allocation6] sm:$0xf]
    %v327 = vld [vmem:[#allocation6 + $0x4] sm:$0xf]
    %v328 = vld [vmem:[#allocation6 + $0x8] sm:$0xf]
    %v329 = vld [vmem:[#allocation6 + $0xc] sm:$0xf]
    %v330 = vld [vmem:[#allocation6 + $0x10] sm:$0xf]
    %v331 = vld [vmem:[#allocation6 + $0x14] sm:$0xf]
    %v332 = vld [vmem:[#allocation6 + $0x18] sm:$0xf]
    %v333 = vld [vmem:[#allocation6 + $0x1c] sm:$0xf]
    %v334 = vld [vmem:[#allocation6 + $0x20] sm:$0xf]
    %v335 = vld [vmem:[#allocation6 + $0x24] sm:$0xf]
    %v336 = vld [vmem:[#allocation6 + $0x28] sm:$0xf]
    %v337 = vld [vmem:[#allocation6 + $0x2c] sm:$0xf]
    %v338 = vld [vmem:[#allocation6 + $0x30] sm:$0xf]
    %v339 = vld [vmem:[#allocation6 + $0x34] sm:$0xf]
    %v340 = vld [vmem:[#allocation6 + $0x38] sm:$0xf]
    %v341 = vld [vmem:[#allocation6 + $0x3c] sm:$0xf]
    %v342 = vld [vmem:[%s6] sm:$0x1]
    %v344 = vlaneseq
    %v345 = vshrl.u32 %v344, 7
    %v346 = vsub.s32 0, %v345
    %v347 = vrot.slane %v342, %v346
    %v365 = vunpack.c.l.b16 %v326
    %v366 = vunpack.c.l.b16 %v327
    %v367 = vunpack.c.l.b16 %v328
    %v368 = vunpack.c.l.b16 %v329
    %v369 = vunpack.c.l.b16 %v330
    %v370 = vunpack.c.l.b16 %v331
    %v371 = vunpack.c.l.b16 %v332
    %v372 = vunpack.c.l.b16 %v333
    %v373 = vunpack.c.l.b16 %v334
    %v374 = vunpack.c.l.b16 %v335
    %v375 = vunpack.c.l.b16 %v336
    %v376 = vunpack.c.l.b16 %v337
    %v377 = vunpack.c.l.b16 %v338
    %v378 = vunpack.c.l.b16 %v339
    %v379 = vunpack.c.l.b16 %v340
    %v380 = vunpack.c.l.b16 %v341
    %v381 = vpack.c.b16 %v366, %v365
    %v382 = vpack.c.b16 %v368, %v367
    %v383 = vpack.c.b16 %v370, %v369
    %v384 = vpack.c.b16 %v372, %v371
    %v385 = vpack.c.b16 %v374, %v373
    %v386 = vpack.c.b16 %v376, %v375
    %v387 = vpack.c.b16 %v378, %v377
    %v388 = vpack.c.b16 %v380, %v379
    %397 = vmatprep.subr.bf16.mxu0 0
    %398 = vmatpush1.bf16.msra.mxu0 %v381
    %399 = vmatprep.subr.bf16.mxu0 0
    %400 = vmatpush1.bf16.msra.mxu0 %v382
    %401 = vmatprep.subr.bf16.mxu0 0
    %402 = vmatpush1.bf16.msra.mxu0 %v383
    %403 = vmatprep.subr.bf16.mxu0 0
    %404 = vmatpush1.bf16.msra.mxu0 %v384
    %405 = vmatprep.subr.bf16.mxu0 0
    %406 = vmatpush1.bf16.msra.mxu0 %v385
    %407 = vmatprep.subr.bf16.mxu0 0
    %408 = vmatpush1.bf16.msra.mxu0 %v386
    %409 = vmatprep.subr.bf16.mxu0 0
    %410 = vmatpush1.bf16.msra.mxu0 %v387
    %411 = vmatprep.subr.bf16.mxu0 0
    %412 = vmatpush1.bf16.msra.mxu0 %v388
    %413 = vmatprep.subr.bf16.mxu0 0
    %414 = vmatpush1.bf16.msra.mxu0 0
    %415 = vmatprep.subr.bf16.mxu0 0
    %416 = vmatpush1.bf16.msra.mxu0 0
    %417 = vmatprep.subr.bf16.mxu0 0
    %418 = vmatpush1.bf16.msra.mxu0 0
    %419 = vmatprep.subr.bf16.mxu0 0
    %420 = vmatpush1.bf16.msra.mxu0 0
    %421 = vmatprep.subr.bf16.mxu0 0
    %422 = vmatpush1.bf16.msra.mxu0 0
    %423 = vmatprep.subr.bf16.mxu0 0
    %424 = vmatpush1.bf16.msra.mxu0 0
    %425 = vmatprep.subr.bf16.mxu0 0
    %426 = vmatpush1.bf16.msra.mxu0 0
    %427 = vmatprep.subr.bf16.mxu0 0
    %428 = vmatpush1.bf16.msra.mxu0 0
    %429 = vmatprep.mubr.bf16.mxu0 0
    %430 = vmatmul.mubr.bf16.gmra.mrb[0].mxu0 %v325
    %v431 = vpop.f32.mrb[0].mxu0
    %v432 = vadd.f32 %v347, %v431
    %v433 = vpop.f32.mrb[0].mxu0
    %v434 = vpop.f32.mrb[0].mxu0
    %v435 = vadd.f32 %v347, %v434
    %v436 = vpop.f32.mrb[0].mxu0
    %437 = vdwg.mxu0
    %v438 = vadd.f32 %v208, %v432
    %v439 = vadd.f32 %v209, %v435
    %v440 = vmax.f32 %v438, 0.0
    %v441 = vmax.f32 %v439, 0.0
    %v442 = vpack.c.bf16 %v441, %v440
    %s443 = scalar_lea.vmem [#allocation4], 64
    %v444 = vld [vmem:[%s443] sm:$0xf]
    %v445 = vld [vmem:[%s443 + $0x4] sm:$0xf]
    %v446 = vld [vmem:[%s443 + $0x8] sm:$0xf]
    %v447 = vld [vmem:[%s443 + $0xc] sm:$0xf]
    %v448 = vld [vmem:[%s443 + $0x10] sm:$0xf]
    %v449 = vld [vmem:[%s443 + $0x14] sm:$0xf]
    %v450 = vld [vmem:[%s443 + $0x18] sm:$0xf]
    %v451 = vld [vmem:[%s443 + $0x1c] sm:$0xf]
    %v452 = vld [vmem:[%s443 + $0x20] sm:$0xf]
    %v453 = vld [vmem:[%s443 + $0x24] sm:$0xf]
    %v454 = vld [vmem:[%s443 + $0x28] sm:$0xf]
    %v455 = vld [vmem:[%s443 + $0x2c] sm:$0xf]
    %v456 = vld [vmem:[%s443 + $0x30] sm:$0xf]
    %v457 = vld [vmem:[%s443 + $0x34] sm:$0xf]
    %v458 = vld [vmem:[%s443 + $0x38] sm:$0xf]
    %v459 = vld [vmem:[%s443 + $0x3c] sm:$0xf]
    %s460 = scalar_lea.vmem %s4, 1
    %v461 = vld [vmem:[%s460] sm:$0x1]
    %v463 = vlaneseq
    %v464 = vshrl.u32 %v463, 7
    %v465 = vsub.s32 0, %v464
    %v466 = vrot.slane %v461, %v465
    %v484 = vunpack.c.l.b16 %v444
    %v485 = vunpack.c.l.b16 %v445
    %v486 = vunpack.c.l.b16 %v446
    %v487 = vunpack.c.l.b16 %v447
    %v488 = vunpack.c.l.b16 %v448
    %v489 = vunpack.c.l.b16 %v449
    %v490 = vunpack.c.l.b16 %v450
    %v491 = vunpack.c.l.b16 %v451
    %v492 = vunpack.c.l.b16 %v452
    %v493 = vunpack.c.l.b16 %v453
    %v494 = vunpack.c.l.b16 %v454
    %v495 = vunpack.c.l.b16 %v455
    %v496 = vunpack.c.l.b16 %v456
    %v497 = vunpack.c.l.b16 %v457
    %v498 = vunpack.c.l.b16 %v458
    %v499 = vunpack.c.l.b16 %v459
    %v500 = vpack.c.b16 %v485, %v484
    %v501 = vpack.c.b16 %v487, %v486
    %v502 = vpack.c.b16 %v489, %v488
    %v503 = vpack.c.b16 %v491, %v490
    %v504 = vpack.c.b16 %v493, %v492
    %v505 = vpack.c.b16 %v495, %v494
    %v506 = vpack.c.b16 %v497, %v496
    %v507 = vpack.c.b16 %v499, %v498
    %516 = vmatprep.subr.bf16.mxu0 0
    %517 = vmatpush1.bf16.msra.mxu0 %v500
    %518 = vmatprep.subr.bf16.mxu0 0
    %519 = vmatpush1.bf16.msra.mxu0 %v501
    %520 = vmatprep.subr.bf16.mxu0 0
    %521 = vmatpush1.bf16.msra.mxu0 %v502
    %522 = vmatprep.subr.bf16.mxu0 0
    %523 = vmatpush1.bf16.msra.mxu0 %v503
    %524 = vmatprep.subr.bf16.mxu0 0
    %525 = vmatpush1.bf16.msra.mxu0 %v504
    %526 = vmatprep.subr.bf16.mxu0 0
    %527 = vmatpush1.bf16.msra.mxu0 %v505
    %528 = vmatprep.subr.bf16.mxu0 0
    %529 = vmatpush1.bf16.msra.mxu0 %v506
    %530 = vmatprep.subr.bf16.mxu0 0
    %531 = vmatpush1.bf16.msra.mxu0 %v507
    %532 = vmatprep.subr.bf16.mxu0 0
    %533 = vmatpush1.bf16.msra.mxu0 0
    %534 = vmatprep.subr.bf16.mxu0 0
    %535 = vmatpush1.bf16.msra.mxu0 0
    %536 = vmatprep.subr.bf16.mxu0 0
    %537 = vmatpush1.bf16.msra.mxu0 0
    %538 = vmatprep.subr.bf16.mxu0 0
    %539 = vmatpush1.bf16.msra.mxu0 0
    %540 = vmatprep.subr.bf16.mxu0 0
    %541 = vmatpush1.bf16.msra.mxu0 0
    %542 = vmatprep.subr.bf16.mxu0 0
    %543 = vmatpush1.bf16.msra.mxu0 0
    %544 = vmatprep.subr.bf16.mxu0 0
    %545 = vmatpush1.bf16.msra.mxu0 0
    %546 = vmatprep.subr.bf16.mxu0 0
    %547 = vmatpush1.bf16.msra.mxu0 0
    %548 = vmatprep.mubr.bf16.mxu0 0
    %549 = vmatmul.mubr.bf16.gmra.mrb[0].mxu0 %v442
    %v550 = vpop.f32.mrb[0].mxu0
    %v551 = vadd.f32 %v466, %v550
    %v552 = vpop.f32.mrb[0].mxu0
    %v553 = vpop.f32.mrb[0].mxu0
    %v554 = vadd.f32 %v466, %v553
    %v555 = vpop.f32.mrb[0].mxu0
    %556 = vdwg.mxu0
    %v557 = vmax.f32 %v551, 0.0
    %v558 = vmax.f32 %v554, 0.0
    %v559 = vpack.c.bf16 %v558, %v557
    %s560 = scalar_lea.vmem [#allocation6], 64
    %v561 = vld [vmem:[%s560] sm:$0xf]
    %v562 = vld [vmem:[%s560 + $0x4] sm:$0xf]
    %v563 = vld [vmem:[%s560 + $0x8] sm:$0xf]
    %v564 = vld [vmem:[%s560 + $0xc] sm:$0xf]
    %v565 = vld [vmem:[%s560 + $0x10] sm:$0xf]
    %v566 = vld [vmem:[%s560 + $0x14] sm:$0xf]
    %v567 = vld [vmem:[%s560 + $0x18] sm:$0xf]
    %v568 = vld [vmem:[%s560 + $0x1c] sm:$0xf]
    %v569 = vld [vmem:[%s560 + $0x20] sm:$0xf]
    %v570 = vld [vmem:[%s560 + $0x24] sm:$0xf]
    %v571 = vld [vmem:[%s560 + $0x28] sm:$0xf]
    %v572 = vld [vmem:[%s560 + $0x2c] sm:$0xf]
    %v573 = vld [vmem:[%s560 + $0x30] sm:$0xf]
    %v574 = vld [vmem:[%s560 + $0x34] sm:$0xf]
    %v575 = vld [vmem:[%s560 + $0x38] sm:$0xf]
    %v576 = vld [vmem:[%s560 + $0x3c] sm:$0xf]
    %s577 = scalar_lea.vmem %s6, 1
    %v578 = vld [vmem:[%s577] sm:$0x1]
    %v580 = vlaneseq
    %v581 = vshrl.u32 %v580, 7
    %v582 = vsub.s32 0, %v581
    %v583 = vrot.slane %v578, %v582
    %v601 = vunpack.c.l.b16 %v561
    %v602 = vunpack.c.l.b16 %v562
    %v603 = vunpack.c.l.b16 %v563
    %v604 = vunpack.c.l.b16 %v564
    %v605 = vunpack.c.l.b16 %v565
    %v606 = vunpack.c.l.b16 %v566
    %v607 = vunpack.c.l.b16 %v567
    %v608 = vunpack.c.l.b16 %v568
    %v609 = vunpack.c.l.b16 %v569
    %v610 = vunpack.c.l.b16 %v570
    %v611 = vunpack.c.l.b16 %v571
    %v612 = vunpack.c.l.b16 %v572
    %v613 = vunpack.c.l.b16 %v573
    %v614 = vunpack.c.l.b16 %v574
    %v615 = vunpack.c.l.b16 %v575
    %v616 = vunpack.c.l.b16 %v576
    %v617 = vpack.c.b16 %v602, %v601
    %v618 = vpack.c.b16 %v604, %v603
    %v619 = vpack.c.b16 %v606, %v605
    %v620 = vpack.c.b16 %v608, %v607
    %v621 = vpack.c.b16 %v610, %v609
    %v622 = vpack.c.b16 %v612, %v611
    %v623 = vpack.c.b16 %v614, %v613
    %v624 = vpack.c.b16 %v616, %v615
    %633 = vmatprep.subr.bf16.mxu0 0
    %634 = vmatpush1.bf16.msra.mxu0 %v617
    %635 = vmatprep.subr.bf16.mxu0 0
    %636 = vmatpush1.bf16.msra.mxu0 %v618
    %637 = vmatprep.subr.bf16.mxu0 0
    %638 = vmatpush1.bf16.msra.mxu0 %v619
    %639 = vmatprep.subr.bf16.mxu0 0
    %640 = vmatpush1.bf16.msra.mxu0 %v620
    %641 = vmatprep.subr.bf16.mxu0 0
    %642 = vmatpush1.bf16.msra.mxu0 %v621
    %643 = vmatprep.subr.bf16.mxu0 0
    %644 = vmatpush1.bf16.msra.mxu0 %v622
    %645 = vmatprep.subr.bf16.mxu0 0
    %646 = vmatpush1.bf16.msra.mxu0 %v623
    %647 = vmatprep.subr.bf16.mxu0 0
    %648 = vmatpush1.bf16.msra.mxu0 %v624
    %649 = vmatprep.subr.bf16.mxu0 0
    %650 = vmatpush1.bf16.msra.mxu0 0
    %651 = vmatprep.subr.bf16.mxu0 0
    %652 = vmatpush1.bf16.msra.mxu0 0
    %653 = vmatprep.subr.bf16.mxu0 0
    %654 = vmatpush1.bf16.msra.mxu0 0
    %655 = vmatprep.subr.bf16.mxu0 0
    %656 = vmatpush1.bf16.msra.mxu0 0
    %657 = vmatprep.subr.bf16.mxu0 0
    %658 = vmatpush1.bf16.msra.mxu0 0
    %659 = vmatprep.subr.bf16.mxu0 0
    %660 = vmatpush1.bf16.msra.mxu0 0
    %661 = vmatprep.subr.bf16.mxu0 0
    %662 = vmatpush1.bf16.msra.mxu0 0
    %663 = vmatprep.subr.bf16.mxu0 0
    %664 = vmatpush1.bf16.msra.mxu0 0
    %665 = vmatprep.mubr.bf16.mxu0 0
    %666 = vmatmul.mubr.bf16.gmra.mrb[0].mxu0 %v559
    %v667 = vpop.f32.mrb[0].mxu0
    %v668 = vadd.f32 %v583, %v667
    %v669 = vpop.f32.mrb[0].mxu0
    %v670 = vpop.f32.mrb[0].mxu0
    %v671 = vadd.f32 %v583, %v670
    %v672 = vpop.f32.mrb[0].mxu0
    %673 = vdwg.mxu0
    %v674 = vadd.f32 %v440, %v668
    %v675 = vadd.f32 %v441, %v671
    %v676 = vmax.f32 %v674, 0.0
    %v677 = vmax.f32 %v675, 0.0
    %v678 = vpack.c.bf16 %v677, %v676
    %v679 = vld [vmem:[#allocation7] sm:$0xf]
    %v680 = vld [vmem:[#allocation7 + $0x4] sm:$0xf]
    %v681 = vld [vmem:[#allocation7 + $0x8] sm:$0xf]
    %v682 = vld [vmem:[#allocation7 + $0xc] sm:$0xf]
    %v683 = vld [vmem:[#allocation7 + $0x10] sm:$0xf]
    %v684 = vld [vmem:[#allocation7 + $0x14] sm:$0xf]
    %v685 = vld [vmem:[#allocation7 + $0x18] sm:$0xf]
    %v686 = vld [vmem:[#allocation7 + $0x1c] sm:$0xf]
    %v687 = vld [vmem:[#allocation7 + $0x20] sm:$0xf]
    %v688 = vld [vmem:[#allocation7 + $0x24] sm:$0xf]
    %v689 = vld [vmem:[#allocation7 + $0x28] sm:$0xf]
    %v690 = vld [vmem:[#allocation7 + $0x2c] sm:$0xf]
    %v691 = vld [vmem:[#allocation7 + $0x30] sm:$0xf]
    %v692 = vld [vmem:[#allocation7 + $0x34] sm:$0xf]
    %v693 = vld [vmem:[#allocation7 + $0x38] sm:$0xf]
    %v694 = vld [vmem:[#allocation7 + $0x3c] sm:$0xf]
    %v695 = vld [vmem:[%s8] sm:$0x1]
    %v697 = vlaneseq
    %v698 = vshrl.u32 %v697, 7
    %v699 = vsub.s32 0, %v698
    %v700 = vrot.slane %v695, %v699
    %v718 = vunpack.c.l.b16 %v679
    %v719 = vunpack.c.l.b16 %v680
    %v720 = vunpack.c.l.b16 %v681
    %v721 = vunpack.c.l.b16 %v682
    %v722 = vunpack.c.l.b16 %v683
    %v723 = vunpack.c.l.b16 %v684
    %v724 = vunpack.c.l.b16 %v685
    %v725 = vunpack.c.l.b16 %v686
    %v726 = vunpack.c.l.b16 %v687
    %v727 = vunpack.c.l.b16 %v688
    %v728 = vunpack.c.l.b16 %v689
    %v729 = vunpack.c.l.b16 %v690
    %v730 = vunpack.c.l.b16 %v691
    %v731 = vunpack.c.l.b16 %v692
    %v732 = vunpack.c.l.b16 %v693
    %v733 = vunpack.c.l.b16 %v694
    %v734 = vpack.c.b16 %v719, %v718
    %v735 = vpack.c.b16 %v721, %v720
    %v736 = vpack.c.b16 %v723, %v722
    %v737 = vpack.c.b16 %v725, %v724
    %v738 = vpack.c.b16 %v727, %v726
    %v739 = vpack.c.b16 %v729, %v728
    %v740 = vpack.c.b16 %v731, %v730
    %v741 = vpack.c.b16 %v733, %v732
    %750 = vmatprep.subr.bf16.mxu0 0
    %751 = vmatpush1.bf16.msra.mxu0 %v734
    %752 = vmatprep.subr.bf16.mxu0 0
    %753 = vmatpush1.bf16.msra.mxu0 %v735
    %754 = vmatprep.subr.bf16.mxu0 0
    %755 = vmatpush1.bf16.msra.mxu0 %v736
    %756 = vmatprep.subr.bf16.mxu0 0
    %757 = vmatpush1.bf16.msra.mxu0 %v737
    %758 = vmatprep.subr.bf16.mxu0 0
    %759 = vmatpush1.bf16.msra.mxu0 %v738
    %760 = vmatprep.subr.bf16.mxu0 0
    %761 = vmatpush1.bf16.msra.mxu0 %v739
    %762 = vmatprep.subr.bf16.mxu0 0
    %763 = vmatpush1.bf16.msra.mxu0 %v740
    %764 = vmatprep.subr.bf16.mxu0 0
    %765 = vmatpush1.bf16.msra.mxu0 %v741
    %766 = vmatprep.subr.bf16.mxu0 0
    %767 = vmatpush1.bf16.msra.mxu0 0
    %768 = vmatprep.subr.bf16.mxu0 0
    %769 = vmatpush1.bf16.msra.mxu0 0
    %770 = vmatprep.subr.bf16.mxu0 0
    %771 = vmatpush1.bf16.msra.mxu0 0
    %772 = vmatprep.subr.bf16.mxu0 0
    %773 = vmatpush1.bf16.msra.mxu0 0
    %774 = vmatprep.subr.bf16.mxu0 0
    %775 = vmatpush1.bf16.msra.mxu0 0
    %776 = vmatprep.subr.bf16.mxu0 0
    %777 = vmatpush1.bf16.msra.mxu0 0
    %778 = vmatprep.subr.bf16.mxu0 0
    %779 = vmatpush1.bf16.msra.mxu0 0
    %780 = vmatprep.subr.bf16.mxu0 0
    %781 = vmatpush1.bf16.msra.mxu0 0
    %782 = vmatprep.mubr.bf16.mxu0 0
    %783 = vmatmul.mubr.bf16.gmra.mrb[0].mxu0 %v678
    %v784 = vpop.f32.mrb[0].mxu0
    %v785 = vadd.f32 %v700, %v784
    %v786 = vpop.f32.mrb[0].mxu0
    %v787 = vpop.f32.mrb[0].mxu0
    %v788 = vadd.f32 %v700, %v787
    %v789 = vpop.f32.mrb[0].mxu0
    %790 = vdwg.mxu0
    %791 = vst [vmem:[%s9] sm:$0xff] %v785
    %792 = vst [vmem:[%s9 + $0x8] sm:$0xff] %v788
    // Predicated region
    $region54: #{residual_fc_forward.1} parent=1 // pred_check
      _
    $region55: #{residual_fc_forward.1} parent=1 // pred_check_branch
      %794 = sbr.rel (0) target = $region57
    $region56: #{residual_fc_forward.1} parent=1 // pred_region
      _
    $region57: #{residual_fc_forward.1} parent=1 // pred_fallthru
      _
    // Predicated region
    $region58: #{residual_fc_forward.1} parent=1 // pred_check
      _
    $region59: #{residual_fc_forward.1} parent=1 // pred_check_branch
      %796 = sbr.rel (0) target = $region61
    $region60: #{residual_fc_forward.1} parent=1 // pred_region
      _
    $region61: #{residual_fc_forward.1} parent=1 // pred_fallthru
      _
    %797 = vsyncpa [#allocation3], 1
    %798 = vsyncpa [#allocation5], 1
    %799 = vsyncpa [#allocation8], 1

</llo_original>
